<compile_context>
chip_gen: v7x
topology: tpu7x:2x2x1
jax: 0.10.0
libtpu: 0.0.40
codegen_flags: <defaults>
</compile_context>

<pallas_src>
import jax
import jax.numpy as jnp
from jax.experimental import pallas as pl
from jax.experimental.pallas import tpu as pltpu

# cfg.TEMPORAL_CONTEXT is taken as False -> feature_dim = 133
FEATURE_DIM = 133
INPUT_TOTAL = 140          # raw input feature width (>= FEATURE_DIM, gets sliced)
HIDDEN_LSTM = 32           # hidden_size_LSTM
OUTPUT_SIZE = 4            # output_size (action space)
SEQ_LEN = 8                # timesteps per sequence


def dqn_kernel(x_ref, h0_ref, c0_ref,
               w1_ref, b1_ref,
               wih_ref, bih_hh_ref, whh_ref,
               wout_ref, bout_ref,
               q_ref, hx_ref, cx_ref):
    """One batch-block: input Linear+ReLU, unrolled LSTM, output Linear.

    x_ref rows are time-major within the block: row = t*BB + j (j = local seq).
    Everything (h, c, gx, hseq) stays vreg-resident; no scratch, no per-step
    VMEM traffic.
    """
    BB, H = hx_ref.shape
    T = x_ref.shape[0] // BB

    # ---- input_layer1 + ReLU : (T*BB, 140) @ (140, 256) ----
    w1 = w1_ref[...]
    x1 = jnp.maximum(
        jnp.dot(x_ref[...].astype(w1.dtype), w1,
                preferred_element_type=jnp.float32) + b1_ref[...],
        0.0,
    )

    # ---- input contribution to all LSTM gates for all timesteps: (T*BB, 4H) ----
    wih = wih_ref[...]
    gx = (jnp.dot(x1.astype(wih.dtype), wih,
                  preferred_element_type=jnp.float32) + bih_hh_ref[...])

    # ---- sequential LSTM, fully unrolled (T is static) -------------------
    # whh loaded once and kept live so the compiler can hold the MXU RHS
    # across all unrolled steps instead of re-staging it every iteration.
    whh = whh_ref[...]
    h = h0_ref[...]                      # (BB, H)  -- carried in vregs
    c = c0_ref[...]                      # (BB, H)
    hs = []
    for t in range(T):                   # static full unroll
        # static, tile-aligned sublane slice of the precomputed gates
        g = gx[t * BB:(t + 1) * BB, :] + jnp.dot(
            h, whh, preferred_element_type=jnp.float32)      # (BB, 4H)
        # PyTorch gate order: i, f, g, o
        i_g = jax.nn.sigmoid(g[:, 0 * H:1 * H])
        f_g = jax.nn.sigmoid(g[:, 1 * H:2 * H])
        g_g = jnp.tanh(g[:, 2 * H:3 * H])
        o_g = jax.nn.sigmoid(g[:, 3 * H:4 * H])
        c = f_g * c + i_g * g_g
        h = o_g * jnp.tanh(c)
        hs.append(h)

    hseq = jnp.concatenate(hs, axis=0)   # (T*BB, H), time-major, vreg-resident

    # ---- output_layer over the whole hidden sequence: (T*BB, H) @ (H, O) ----
    q_ref[...] = (jnp.dot(hseq, wout_ref[...],
                          preferred_element_type=jnp.float32) + bout_ref[...])
    hx_ref[...] = h
    cx_ref[...] = c


def dqn_forward(inputs, hidden, params, *, block_b=8, matmul_dtype=jnp.float32):
    """Batched DQN forward.

    inputs: (B, T, INPUT_TOTAL) float32 -- B independent sequences, each
            identical in semantics to the PyTorch module's (T, features) input.
    hidden: (h0, c0), each (B, H).
    Returns q: (B, T, OUTPUT_SIZE), (hx, cx): each (B, H).
    """
    h0, c0 = hidden
    B, T, F = inputs.shape
    H = h0.shape[-1]
    O = params["w_out"].shape[0]
    assert F >= FEATURE_DIM

    BB = min(block_b, B)
    assert B % BB == 0, "batch must be divisible by the batch block"
    NB = B // BB

    # ---- one-time host-side weight prep (plain JAX glue) ----
    # Fold the `inputs[:, :feature_dim]` slice into the first linear by
    # zero-padding W1^T rows to the full input width: numerically identical,
    # removes a host op and keeps the kernel's K aligned.
    w1t = jnp.zeros((F, 256), jnp.float32).at[:FEATURE_DIM, :].set(params["w1"].T)
    w1t = w1t.astype(matmul_dtype)                           # (F, 256)
    wiht = params["w_ih"].T.astype(matmul_dtype)             # (256, 4H)
    b1 = params["b1"][None, :].astype(jnp.float32)           # (1, 256)
    bih_hh = (params["b_ih"] + params["b_hh"])[None, :].astype(jnp.float32)
    whht = params["w_hh"].T.astype(jnp.float32)              # (H, 4H)  f32 recurrence
    woutt = params["w_out"].T.astype(jnp.float32)            # (H, O)
    bout = params["b_out"][None, :].astype(jnp.float32)      # (1, O)

    # ---- time-major, batch-blocked input layout: row = g*T*BB + t*BB + j ----
    x_k = (inputs.reshape(NB, BB, T, F)
                 .transpose(0, 2, 1, 3)
                 .reshape(NB * T * BB, F))

    q_k, hx, cx = pl.pallas_call(
        dqn_kernel,
        grid=(NB,),
        out_shape=(
            jax.ShapeDtypeStruct((B * T, O), jnp.float32),
            jax.ShapeDtypeStruct((B, H), jnp.float32),
            jax.ShapeDtypeStruct((B, H), jnp.float32),
        ),
        in_specs=[
            pl.BlockSpec((T * BB, F), lambda g: (g, 0)),       # x  (per batch block)
            pl.BlockSpec((BB, H), lambda g: (g, 0)),           # h0
            pl.BlockSpec((BB, H), lambda g: (g, 0)),           # c0
            pl.BlockSpec(w1t.shape, lambda g: (0, 0)),         # W1^T (padded)
            pl.BlockSpec(b1.shape, lambda g: (0, 0)),
            pl.BlockSpec(wiht.shape, lambda g: (0, 0)),        # W_ih^T
            pl.BlockSpec(bih_hh.shape, lambda g: (0, 0)),
            pl.BlockSpec(whht.shape, lambda g: (0, 0)),        # W_hh^T
            pl.BlockSpec(woutt.shape, lambda g: (0, 0)),       # W_out^T
            pl.BlockSpec(bout.shape, lambda g: (0, 0)),
        ],
        out_specs=(
            pl.BlockSpec((T * BB, O), lambda g: (g, 0)),       # q (time-major)
            pl.BlockSpec((BB, H), lambda g: (g, 0)),           # hx
            pl.BlockSpec((BB, H), lambda g: (g, 0)),           # cx
        ),
        compiler_params=pltpu.CompilerParams(
            dimension_semantics=("parallel",)),                # batch blocks -> both TCs on v7x
    )(x_k, h0, c0, w1t, b1, wiht, bih_hh, whht, woutt, bout)

    q = q_k.reshape(NB, T, BB, O).transpose(0, 2, 1, 3).reshape(B, T, O)
    return q, (hx, cx)


def ref_forward(inputs, hidden, params):
    """Pure-JAX reference mirroring the PyTorch module, per sequence."""
    x = inputs[..., :FEATURE_DIM]                              # (B, T, 133)
    x1 = jax.nn.relu(x @ params["w1"].T + params["b1"])        # (B, T, 256)
    h, c = hidden
    H = h.shape[-1]
    hs = []
    for t in range(x1.shape[1]):
        g = (x1[:, t] @ params["w_ih"].T + params["b_ih"]
             + h @ params["w_hh"].T + params["b_hh"])
        i = jax.nn.sigmoid(g[:, 0 * H:1 * H])
        f = jax.nn.sigmoid(g[:, 1 * H:2 * H])
        gg = jnp.tanh(g[:, 2 * H:3 * H])
        o = jax.nn.sigmoid(g[:, 3 * H:4 * H])
        c = f * c + i * gg
        h = o * jnp.tanh(c)
        hs.append(h)
    hseq = jnp.stack(hs, axis=1)                               # (B, T, H)
    q = hseq @ params["w_out"].T + params["b_out"]
    return q, (h, c)


def make_params(key):
    ks = jax.random.split(key, 6)
    H = HIDDEN_LSTM
    scale = 0.1
    return {
        # input_layer1: Linear(133, 256)
        "w1": scale * jax.random.normal(ks[0], (256, FEATURE_DIM), jnp.float32),
        "b1": scale * jax.random.normal(ks[1], (256,), jnp.float32),
        # lstm: LSTM(256, H) -- biases zeroed per init_lstm_weights
        "w_ih": scale * jax.random.normal(ks[2], (4 * H, 256), jnp.float32),
        "w_hh": scale * jax.random.normal(ks[3], (4 * H, H), jnp.float32),
        "b_ih": jnp.zeros((4 * H,), jnp.float32),
        "b_hh": jnp.zeros((4 * H,), jnp.float32),
        # output_layer: Linear(H, output_size)
        "w_out": scale * jax.random.normal(ks[4], (OUTPUT_SIZE, H), jnp.float32),
        "b_out": scale * jax.random.normal(ks[5], (OUTPUT_SIZE,), jnp.float32),
    }


if __name__ == "__main__":
    key = jax.random.PRNGKey(0)
    k_in, k_h, k_c, k_p = jax.random.split(key, 4)

    B, T, H = 16, SEQ_LEN, HIDDEN_LSTM    # 2 batch blocks of 8 -> grid=(2,) parallel
    params = make_params(k_p)
    inputs = jax.random.normal(k_in, (B, T, INPUT_TOTAL), jnp.float32)
    h0 = 0.1 * jax.random.normal(k_h, (B, H), jnp.float32)
    c0 = 0.1 * jax.random.normal(k_c, (B, H), jnp.float32)
    hidden = (h0, c0)

    q, (hx, cx) = dqn_forward(inputs, hidden, params)
    jax.block_until_ready((q, hx, cx))

    q_ref, (hx_ref, cx_ref) = ref_forward(inputs, hidden, params)
    assert q.shape == (B, T, OUTPUT_SIZE)
    assert jnp.allclose(q, q_ref, atol=1e-4, rtol=1e-4)
    assert jnp.allclose(hx, hx_ref, atol=1e-4, rtol=1e-4)
    assert jnp.allclose(cx, cx_ref, atol=1e-4, rtol=1e-4)

    print("KERNEL_OK")
</pallas_src>

<mosaic_0001>
module attributes {stable_mosaic.version = 11 : i64} {
  func.func @dqn_kernel(%arg0: i32, %arg1: memref<64x140xf32, #tpu.memory_space<vmem>>, %arg2: memref<8x32xf32, #tpu.memory_space<vmem>>, %arg3: memref<8x32xf32, #tpu.memory_space<vmem>>, %arg4: memref<140x256xf32, #tpu.memory_space<vmem>>, %arg5: memref<1x256xf32, #tpu.memory_space<vmem>>, %arg6: memref<256x128xf32, #tpu.memory_space<vmem>>, %arg7: memref<1x128xf32, #tpu.memory_space<vmem>>, %arg8: memref<32x128xf32, #tpu.memory_space<vmem>>, %arg9: memref<32x4xf32, #tpu.memory_space<vmem>>, %arg10: memref<1x4xf32, #tpu.memory_space<vmem>>, %arg11: memref<64x4xf32, #tpu.memory_space<vmem>>, %arg12: memref<8x32xf32, #tpu.memory_space<vmem>>, %arg13: memref<8x32xf32, #tpu.memory_space<vmem>>) attributes {dimension_semantics = [#tpu.dimension_semantics<parallel>], iteration_bounds = array<i64: 2>, scalar_prefetch = 0 : i64, scratch_operands = 0 : i64, tpu.core_type = #tpu.core_type<tc>, window_params = [{transform_indices = @transform_0, window_bounds = array<i64: 64, 140>}, {transform_indices = @transform_1, window_bounds = array<i64: 8, 32>}, {transform_indices = @transform_2, window_bounds = array<i64: 8, 32>}, {pipeline_mode = #tpu.pipeline_mode<synchronous>, transform_indices = @transform_3, window_bounds = array<i64: 140, 256>}, {pipeline_mode = #tpu.pipeline_mode<synchronous>, transform_indices = @transform_4, window_bounds = array<i64: 1, 256>}, {pipeline_mode = #tpu.pipeline_mode<synchronous>, transform_indices = @transform_5, window_bounds = array<i64: 256, 128>}, {pipeline_mode = #tpu.pipeline_mode<synchronous>, transform_indices = @transform_6, window_bounds = array<i64: 1, 128>}, {pipeline_mode = #tpu.pipeline_mode<synchronous>, transform_indices = @transform_7, window_bounds = array<i64: 32, 128>}, {pipeline_mode = #tpu.pipeline_mode<synchronous>, transform_indices = @transform_8, window_bounds = array<i64: 32, 4>}, {pipeline_mode = #tpu.pipeline_mode<synchronous>, transform_indices = @transform_9, window_bounds = array<i64: 1, 4>}, {transform_indices = @transform_10, window_bounds = array<i64: 64, 4>}, {transform_indices = @transform_11, window_bounds = array<i64: 8, 32>}, {transform_indices = @transform_12, window_bounds = array<i64: 8, 32>}]} {
    %c0 = arith.constant 0 : index
    %c0_0 = arith.constant 0 : index
    %0 = vector.load %arg4[%c0, %c0_0] : memref<140x256xf32, #tpu.memory_space<vmem>>, vector<140x256xf32>
    %c0_1 = arith.constant 0 : index
    %c0_2 = arith.constant 0 : index
    %1 = vector.load %arg1[%c0_1, %c0_2] : memref<64x140xf32, #tpu.memory_space<vmem>>, vector<64x140xf32>
    %cst = arith.constant dense<0.000000e+00> : vector<64x256xf32>
    %2 = tpu.matmul %1, %0, %cst {dimension_numbers = #tpu.dot_dimension_numbers<[1], [0], [0], [1], [0, 0, 1, 1], [], []>} : vector<64x140xf32>, vector<140x256xf32>, vector<64x256xf32> -> vector<64x256xf32>
    %c0_3 = arith.constant 0 : index
    %c0_4 = arith.constant 0 : index
    %3 = vector.load %arg5[%c0_3, %c0_4] : memref<1x256xf32, #tpu.memory_space<vmem>>, vector<1x256xf32>
    %4 = vector.broadcast %3 : vector<1x256xf32> to vector<64x256xf32>
    %5 = arith.addf %2, %4 : vector<64x256xf32>
    %cst_5 = arith.constant 0.000000e+00 : f32
    %6 = vector.broadcast %cst_5 : f32 to vector<64x256xf32>
    %7 = arith.maximumf %5, %6 : vector<64x256xf32>
    %c0_6 = arith.constant 0 : index
    %c0_7 = arith.constant 0 : index
    %8 = vector.load %arg6[%c0_6, %c0_7] : memref<256x128xf32, #tpu.memory_space<vmem>>, vector<256x128xf32>
    %cst_8 = arith.constant dense<0.000000e+00> : vector<64x128xf32>
    %9 = tpu.matmul %7, %8, %cst_8 {dimension_numbers = #tpu.dot_dimension_numbers<[1], [0], [0], [1], [0, 0, 1, 1], [], []>} : vector<64x256xf32>, vector<256x128xf32>, vector<64x128xf32> -> vector<64x128xf32>
    %c0_9 = arith.constant 0 : index
    %c0_10 = arith.constant 0 : index
    %10 = vector.load %arg7[%c0_9, %c0_10] : memref<1x128xf32, #tpu.memory_space<vmem>>, vector<1x128xf32>
    %11 = vector.broadcast %10 : vector<1x128xf32> to vector<64x128xf32>
    %12 = arith.addf %9, %11 : vector<64x128xf32>
    %c0_11 = arith.constant 0 : index
    %c0_12 = arith.constant 0 : index
    %13 = vector.load %arg8[%c0_11, %c0_12] : memref<32x128xf32, #tpu.memory_space<vmem>>, vector<32x128xf32>
    %c0_13 = arith.constant 0 : index
    %c0_14 = arith.constant 0 : index
    %14 = vector.load %arg2[%c0_13, %c0_14] : memref<8x32xf32, #tpu.memory_space<vmem>>, vector<8x32xf32>
    %c0_15 = arith.constant 0 : index
    %c0_16 = arith.constant 0 : index
    %15 = vector.load %arg3[%c0_15, %c0_16] : memref<8x32xf32, #tpu.memory_space<vmem>>, vector<8x32xf32>
    %16 = vector.extract_strided_slice %12 {offsets = [0, 0], sizes = [8, 128], strides = [1, 1]} : vector<64x128xf32> to vector<8x128xf32>
    %cst_17 = arith.constant dense<0.000000e+00> : vector<8x128xf32>
    %17 = tpu.matmul %14, %13, %cst_17 {dimension_numbers = #tpu.dot_dimension_numbers<[1], [0], [0], [1], [0, 0, 1, 1], [], []>} : vector<8x32xf32>, vector<32x128xf32>, vector<8x128xf32> -> vector<8x128xf32>
    %18 = arith.addf %16, %17 : vector<8x128xf32>
    %19 = vector.extract_strided_slice %18 {offsets = [0, 0], sizes = [8, 32], strides = [1, 1]} : vector<8x128xf32> to vector<8x32xf32>
    %20 = arith.negf %19 : vector<8x32xf32>
    %21 = math.exp %20 : vector<8x32xf32>
    %cst_18 = arith.constant 1.000000e+00 : f32
    %22 = vector.broadcast %cst_18 : f32 to vector<8x32xf32>
    %23 = arith.addf %22, %21 : vector<8x32xf32>
    %24 = arith.divf %22, %23 : vector<8x32xf32>
    %25 = vector.extract_strided_slice %18 {offsets = [0, 32], sizes = [8, 32], strides = [1, 1]} : vector<8x128xf32> to vector<8x32xf32>
    %26 = arith.negf %25 : vector<8x32xf32>
    %27 = math.exp %26 : vector<8x32xf32>
    %cst_19 = arith.constant 1.000000e+00 : f32
    %28 = vector.broadcast %cst_19 : f32 to vector<8x32xf32>
    %29 = arith.addf %28, %27 : vector<8x32xf32>
    %30 = arith.divf %28, %29 : vector<8x32xf32>
    %31 = vector.extract_strided_slice %18 {offsets = [0, 64], sizes = [8, 32], strides = [1, 1]} : vector<8x128xf32> to vector<8x32xf32>
    %32 = math.tanh %31 : vector<8x32xf32>
    %33 = vector.extract_strided_slice %18 {offsets = [0, 96], sizes = [8, 32], strides = [1, 1]} : vector<8x128xf32> to vector<8x32xf32>
    %34 = arith.negf %33 : vector<8x32xf32>
    %35 = math.exp %34 : vector<8x32xf32>
    %cst_20 = arith.constant 1.000000e+00 : f32
    %36 = vector.broadcast %cst_20 : f32 to vector<8x32xf32>
    %37 = arith.addf %36, %35 : vector<8x32xf32>
    %38 = arith.divf %36, %37 : vector<8x32xf32>
    %39 = arith.mulf %30, %15 : vector<8x32xf32>
    %40 = arith.mulf %24, %32 : vector<8x32xf32>
    %41 = arith.addf %39, %40 : vector<8x32xf32>
    %42 = math.tanh %41 : vector<8x32xf32>
    %43 = arith.mulf %38, %42 : vector<8x32xf32>
    %44 = vector.extract_strided_slice %12 {offsets = [8, 0], sizes = [8, 128], strides = [1, 1]} : vector<64x128xf32> to vector<8x128xf32>
    %cst_21 = arith.constant dense<0.000000e+00> : vector<8x128xf32>
    %45 = tpu.matmul %43, %13, %cst_21 {dimension_numbers = #tpu.dot_dimension_numbers<[1], [0], [0], [1], [0, 0, 1, 1], [], []>} : vector<8x32xf32>, vector<32x128xf32>, vector<8x128xf32> -> vector<8x128xf32>
    %46 = arith.addf %44, %45 : vector<8x128xf32>
    %47 = vector.extract_strided_slice %46 {offsets = [0, 0], sizes = [8, 32], strides = [1, 1]} : vector<8x128xf32> to vector<8x32xf32>
    %48 = arith.negf %47 : vector<8x32xf32>
    %49 = math.exp %48 : vector<8x32xf32>
    %cst_22 = arith.constant 1.000000e+00 : f32
    %50 = vector.broadcast %cst_22 : f32 to vector<8x32xf32>
    %51 = arith.addf %50, %49 : vector<8x32xf32>
    %52 = arith.divf %50, %51 : vector<8x32xf32>
    %53 = vector.extract_strided_slice %46 {offsets = [0, 32], sizes = [8, 32], strides = [1, 1]} : vector<8x128xf32> to vector<8x32xf32>
    %54 = arith.negf %53 : vector<8x32xf32>
    %55 = math.exp %54 : vector<8x32xf32>
    %cst_23 = arith.constant 1.000000e+00 : f32
    %56 = vector.broadcast %cst_23 : f32 to vector<8x32xf32>
    %57 = arith.addf %56, %55 : vector<8x32xf32>
    %58 = arith.divf %56, %57 : vector<8x32xf32>
    %59 = vector.extract_strided_slice %46 {offsets = [0, 64], sizes = [8, 32], strides = [1, 1]} : vector<8x128xf32> to vector<8x32xf32>
    %60 = math.tanh %59 : vector<8x32xf32>
    %61 = vector.extract_strided_slice %46 {offsets = [0, 96], sizes = [8, 32], strides = [1, 1]} : vector<8x128xf32> to vector<8x32xf32>
    %62 = arith.negf %61 : vector<8x32xf32>
    %63 = math.exp %62 : vector<8x32xf32>
    %cst_24 = arith.constant 1.000000e+00 : f32
    %64 = vector.broadcast %cst_24 : f32 to vector<8x32xf32>
    %65 = arith.addf %64, %63 : vector<8x32xf32>
    %66 = arith.divf %64, %65 : vector<8x32xf32>
    %67 = arith.mulf %58, %41 : vector<8x32xf32>
    %68 = arith.mulf %52, %60 : vector<8x32xf32>
    %69 = arith.addf %67, %68 : vector<8x32xf32>
    %70 = math.tanh %69 : vector<8x32xf32>
    %71 = arith.mulf %66, %70 : vector<8x32xf32>
    %72 = vector.extract_strided_slice %12 {offsets = [16, 0], sizes = [8, 128], strides = [1, 1]} : vector<64x128xf32> to vector<8x128xf32>
    %cst_25 = arith.constant dense<0.000000e+00> : vector<8x128xf32>
    %73 = tpu.matmul %71, %13, %cst_25 {dimension_numbers = #tpu.dot_dimension_numbers<[1], [0], [0], [1], [0, 0, 1, 1], [], []>} : vector<8x32xf32>, vector<32x128xf32>, vector<8x128xf32> -> vector<8x128xf32>
    %74 = arith.addf %72, %73 : vector<8x128xf32>
    %75 = vector.extract_strided_slice %74 {offsets = [0, 0], sizes = [8, 32], strides = [1, 1]} : vector<8x128xf32> to vector<8x32xf32>
    %76 = arith.negf %75 : vector<8x32xf32>
    %77 = math.exp %76 : vector<8x32xf32>
    %cst_26 = arith.constant 1.000000e+00 : f32
    %78 = vector.broadcast %cst_26 : f32 to vector<8x32xf32>
    %79 = arith.addf %78, %77 : vector<8x32xf32>
    %80 = arith.divf %78, %79 : vector<8x32xf32>
    %81 = vector.extract_strided_slice %74 {offsets = [0, 32], sizes = [8, 32], strides = [1, 1]} : vector<8x128xf32> to vector<8x32xf32>
    %82 = arith.negf %81 : vector<8x32xf32>
    %83 = math.exp %82 : vector<8x32xf32>
    %cst_27 = arith.constant 1.000000e+00 : f32
    %84 = vector.broadcast %cst_27 : f32 to vector<8x32xf32>
    %85 = arith.addf %84, %83 : vector<8x32xf32>
    %86 = arith.divf %84, %85 : vector<8x32xf32>
    %87 = vector.extract_strided_slice %74 {offsets = [0, 64], sizes = [8, 32], strides = [1, 1]} : vector<8x128xf32> to vector<8x32xf32>
    %88 = math.tanh %87 : vector<8x32xf32>
    %89 = vector.extract_strided_slice %74 {offsets = [0, 96], sizes = [8, 32], strides = [1, 1]} : vector<8x128xf32> to vector<8x32xf32>
    %90 = arith.negf %89 : vector<8x32xf32>
    %91 = math.exp %90 : vector<8x32xf32>
    %cst_28 = arith.constant 1.000000e+00 : f32
    %92 = vector.broadcast %cst_28 : f32 to vector<8x32xf32>
    %93 = arith.addf %92, %91 : vector<8x32xf32>
    %94 = arith.divf %92, %93 : vector<8x32xf32>
    %95 = arith.mulf %86, %69 : vector<8x32xf32>
    %96 = arith.mulf %80, %88 : vector<8x32xf32>
    %97 = arith.addf %95, %96 : vector<8x32xf32>
    %98 = math.tanh %97 : vector<8x32xf32>
    %99 = arith.mulf %94, %98 : vector<8x32xf32>
    %100 = vector.extract_strided_slice %12 {offsets = [24, 0], sizes = [8, 128], strides = [1, 1]} : vector<64x128xf32> to vector<8x128xf32>
    %cst_29 = arith.constant dense<0.000000e+00> : vector<8x128xf32>
    %101 = tpu.matmul %99, %13, %cst_29 {dimension_numbers = #tpu.dot_dimension_numbers<[1], [0], [0], [1], [0, 0, 1, 1], [], []>} : vector<8x32xf32>, vector<32x128xf32>, vector<8x128xf32> -> vector<8x128xf32>
    %102 = arith.addf %100, %101 : vector<8x128xf32>
    %103 = vector.extract_strided_slice %102 {offsets = [0, 0], sizes = [8, 32], strides = [1, 1]} : vector<8x128xf32> to vector<8x32xf32>
    %104 = arith.negf %103 : vector<8x32xf32>
    %105 = math.exp %104 : vector<8x32xf32>
    %cst_30 = arith.constant 1.000000e+00 : f32
    %106 = vector.broadcast %cst_30 : f32 to vector<8x32xf32>
    %107 = arith.addf %106, %105 : vector<8x32xf32>
    %108 = arith.divf %106, %107 : vector<8x32xf32>
    %109 = vector.extract_strided_slice %102 {offsets = [0, 32], sizes = [8, 32], strides = [1, 1]} : vector<8x128xf32> to vector<8x32xf32>
    %110 = arith.negf %109 : vector<8x32xf32>
    %111 = math.exp %110 : vector<8x32xf32>
    %cst_31 = arith.constant 1.000000e+00 : f32
    %112 = vector.broadcast %cst_31 : f32 to vector<8x32xf32>
    %113 = arith.addf %112, %111 : vector<8x32xf32>
    %114 = arith.divf %112, %113 : vector<8x32xf32>
    %115 = vector.extract_strided_slice %102 {offsets = [0, 64], sizes = [8, 32], strides = [1, 1]} : vector<8x128xf32> to vector<8x32xf32>
    %116 = math.tanh %115 : vector<8x32xf32>
    %117 = vector.extract_strided_slice %102 {offsets = [0, 96], sizes = [8, 32], strides = [1, 1]} : vector<8x128xf32> to vector<8x32xf32>
    %118 = arith.negf %117 : vector<8x32xf32>
    %119 = math.exp %118 : vector<8x32xf32>
    %cst_32 = arith.constant 1.000000e+00 : f32
    %120 = vector.broadcast %cst_32 : f32 to vector<8x32xf32>
    %121 = arith.addf %120, %119 : vector<8x32xf32>
    %122 = arith.divf %120, %121 : vector<8x32xf32>
    %123 = arith.mulf %114, %97 : vector<8x32xf32>
    %124 = arith.mulf %108, %116 : vector<8x32xf32>
    %125 = arith.addf %123, %124 : vector<8x32xf32>
    %126 = math.tanh %125 : vector<8x32xf32>
    %127 = arith.mulf %122, %126 : vector<8x32xf32>
    %128 = vector.extract_strided_slice %12 {offsets = [32, 0], sizes = [8, 128], strides = [1, 1]} : vector<64x128xf32> to vector<8x128xf32>
    %cst_33 = arith.constant dense<0.000000e+00> : vector<8x128xf32>
    %129 = tpu.matmul %127, %13, %cst_33 {dimension_numbers = #tpu.dot_dimension_numbers<[1], [0], [0], [1], [0, 0, 1, 1], [], []>} : vector<8x32xf32>, vector<32x128xf32>, vector<8x128xf32> -> vector<8x128xf32>
    %130 = arith.addf %128, %129 : vector<8x128xf32>
    %131 = vector.extract_strided_slice %130 {offsets = [0, 0], sizes = [8, 32], strides = [1, 1]} : vector<8x128xf32> to vector<8x32xf32>
    %132 = arith.negf %131 : vector<8x32xf32>
    %133 = math.exp %132 : vector<8x32xf32>
    %cst_34 = arith.constant 1.000000e+00 : f32
    %134 = vector.broadcast %cst_34 : f32 to vector<8x32xf32>
    %135 = arith.addf %134, %133 : vector<8x32xf32>
    %136 = arith.divf %134, %135 : vector<8x32xf32>
    %137 = vector.extract_strided_slice %130 {offsets = [0, 32], sizes = [8, 32], strides = [1, 1]} : vector<8x128xf32> to vector<8x32xf32>
    %138 = arith.negf %137 : vector<8x32xf32>
    %139 = math.exp %138 : vector<8x32xf32>
    %cst_35 = arith.constant 1.000000e+00 : f32
    %140 = vector.broadcast %cst_35 : f32 to vector<8x32xf32>
    %141 = arith.addf %140, %139 : vector<8x32xf32>
    %142 = arith.divf %140, %141 : vector<8x32xf32>
    %143 = vector.extract_strided_slice %130 {offsets = [0, 64], sizes = [8, 32], strides = [1, 1]} : vector<8x128xf32> to vector<8x32xf32>
    %144 = math.tanh %143 : vector<8x32xf32>
    %145 = vector.extract_strided_slice %130 {offsets = [0, 96], sizes = [8, 32], strides = [1, 1]} : vector<8x128xf32> to vector<8x32xf32>
    %146 = arith.negf %145 : vector<8x32xf32>
    %147 = math.exp %146 : vector<8x32xf32>
    %cst_36 = arith.constant 1.000000e+00 : f32
    %148 = vector.broadcast %cst_36 : f32 to vector<8x32xf32>
    %149 = arith.addf %148, %147 : vector<8x32xf32>
    %150 = arith.divf %148, %149 : vector<8x32xf32>
    %151 = arith.mulf %142, %125 : vector<8x32xf32>
    %152 = arith.mulf %136, %144 : vector<8x32xf32>
    %153 = arith.addf %151, %152 : vector<8x32xf32>
    %154 = math.tanh %153 : vector<8x32xf32>
    %155 = arith.mulf %150, %154 : vector<8x32xf32>
    %156 = vector.extract_strided_slice %12 {offsets = [40, 0], sizes = [8, 128], strides = [1, 1]} : vector<64x128xf32> to vector<8x128xf32>
    %cst_37 = arith.constant dense<0.000000e+00> : vector<8x128xf32>
    %157 = tpu.matmul %155, %13, %cst_37 {dimension_numbers = #tpu.dot_dimension_numbers<[1], [0], [0], [1], [0, 0, 1, 1], [], []>} : vector<8x32xf32>, vector<32x128xf32>, vector<8x128xf32> -> vector<8x128xf32>
    %158 = arith.addf %156, %157 : vector<8x128xf32>
    %159 = vector.extract_strided_slice %158 {offsets = [0, 0], sizes = [8, 32], strides = [1, 1]} : vector<8x128xf32> to vector<8x32xf32>
    %160 = arith.negf %159 : vector<8x32xf32>
    %161 = math.exp %160 : vector<8x32xf32>
    %cst_38 = arith.constant 1.000000e+00 : f32
    %162 = vector.broadcast %cst_38 : f32 to vector<8x32xf32>
    %163 = arith.addf %162, %161 : vector<8x32xf32>
    %164 = arith.divf %162, %163 : vector<8x32xf32>
    %165 = vector.extract_strided_slice %158 {offsets = [0, 32], sizes = [8, 32], strides = [1, 1]} : vector<8x128xf32> to vector<8x32xf32>
    %166 = arith.negf %165 : vector<8x32xf32>
    %167 = math.exp %166 : vector<8x32xf32>
    %cst_39 = arith.constant 1.000000e+00 : f32
    %168 = vector.broadcast %cst_39 : f32 to vector<8x32xf32>
    %169 = arith.addf %168, %167 : vector<8x32xf32>
    %170 = arith.divf %168, %169 : vector<8x32xf32>
    %171 = vector.extract_strided_slice %158 {offsets = [0, 64], sizes = [8, 32], strides = [1, 1]} : vector<8x128xf32> to vector<8x32xf32>
    %172 = math.tanh %171 : vector<8x32xf32>
    %173 = vector.extract_strided_slice %158 {offsets = [0, 96], sizes = [8, 32], strides = [1, 1]} : vector<8x128xf32> to vector<8x32xf32>
    %174 = arith.negf %173 : vector<8x32xf32>
    %175 = math.exp %174 : vector<8x32xf32>
    %cst_40 = arith.constant 1.000000e+00 : f32
    %176 = vector.broadcast %cst_40 : f32 to vector<8x32xf32>
    %177 = arith.addf %176, %175 : vector<8x32xf32>
    %178 = arith.divf %176, %177 : vector<8x32xf32>
    %179 = arith.mulf %170, %153 : vector<8x32xf32>
    %180 = arith.mulf %164, %172 : vector<8x32xf32>
    %181 = arith.addf %179, %180 : vector<8x32xf32>
    %182 = math.tanh %181 : vector<8x32xf32>
    %183 = arith.mulf %178, %182 : vector<8x32xf32>
    %184 = vector.extract_strided_slice %12 {offsets = [48, 0], sizes = [8, 128], strides = [1, 1]} : vector<64x128xf32> to vector<8x128xf32>
    %cst_41 = arith.constant dense<0.000000e+00> : vector<8x128xf32>
    %185 = tpu.matmul %183, %13, %cst_41 {dimension_numbers = #tpu.dot_dimension_numbers<[1], [0], [0], [1], [0, 0, 1, 1], [], []>} : vector<8x32xf32>, vector<32x128xf32>, vector<8x128xf32> -> vector<8x128xf32>
    %186 = arith.addf %184, %185 : vector<8x128xf32>
    %187 = vector.extract_strided_slice %186 {offsets = [0, 0], sizes = [8, 32], strides = [1, 1]} : vector<8x128xf32> to vector<8x32xf32>
    %188 = arith.negf %187 : vector<8x32xf32>
    %189 = math.exp %188 : vector<8x32xf32>
    %cst_42 = arith.constant 1.000000e+00 : f32
    %190 = vector.broadcast %cst_42 : f32 to vector<8x32xf32>
    %191 = arith.addf %190, %189 : vector<8x32xf32>
    %192 = arith.divf %190, %191 : vector<8x32xf32>
    %193 = vector.extract_strided_slice %186 {offsets = [0, 32], sizes = [8, 32], strides = [1, 1]} : vector<8x128xf32> to vector<8x32xf32>
    %194 = arith.negf %193 : vector<8x32xf32>
    %195 = math.exp %194 : vector<8x32xf32>
    %cst_43 = arith.constant 1.000000e+00 : f32
    %196 = vector.broadcast %cst_43 : f32 to vector<8x32xf32>
    %197 = arith.addf %196, %195 : vector<8x32xf32>
    %198 = arith.divf %196, %197 : vector<8x32xf32>
    %199 = vector.extract_strided_slice %186 {offsets = [0, 64], sizes = [8, 32], strides = [1, 1]} : vector<8x128xf32> to vector<8x32xf32>
    %200 = math.tanh %199 : vector<8x32xf32>
    %201 = vector.extract_strided_slice %186 {offsets = [0, 96], sizes = [8, 32], strides = [1, 1]} : vector<8x128xf32> to vector<8x32xf32>
    %202 = arith.negf %201 : vector<8x32xf32>
    %203 = math.exp %202 : vector<8x32xf32>
    %cst_44 = arith.constant 1.000000e+00 : f32
    %204 = vector.broadcast %cst_44 : f32 to vector<8x32xf32>
    %205 = arith.addf %204, %203 : vector<8x32xf32>
    %206 = arith.divf %204, %205 : vector<8x32xf32>
    %207 = arith.mulf %198, %181 : vector<8x32xf32>
    %208 = arith.mulf %192, %200 : vector<8x32xf32>
    %209 = arith.addf %207, %208 : vector<8x32xf32>
    %210 = math.tanh %209 : vector<8x32xf32>
    %211 = arith.mulf %206, %210 : vector<8x32xf32>
    %212 = vector.extract_strided_slice %12 {offsets = [56, 0], sizes = [8, 128], strides = [1, 1]} : vector<64x128xf32> to vector<8x128xf32>
    %cst_45 = arith.constant dense<0.000000e+00> : vector<8x128xf32>
    %213 = tpu.matmul %211, %13, %cst_45 {dimension_numbers = #tpu.dot_dimension_numbers<[1], [0], [0], [1], [0, 0, 1, 1], [], []>} : vector<8x32xf32>, vector<32x128xf32>, vector<8x128xf32> -> vector<8x128xf32>
    %214 = arith.addf %212, %213 : vector<8x128xf32>
    %215 = vector.extract_strided_slice %214 {offsets = [0, 0], sizes = [8, 32], strides = [1, 1]} : vector<8x128xf32> to vector<8x32xf32>
    %216 = arith.negf %215 : vector<8x32xf32>
    %217 = math.exp %216 : vector<8x32xf32>
    %cst_46 = arith.constant 1.000000e+00 : f32
    %218 = vector.broadcast %cst_46 : f32 to vector<8x32xf32>
    %219 = arith.addf %218, %217 : vector<8x32xf32>
    %220 = arith.divf %218, %219 : vector<8x32xf32>
    %221 = vector.extract_strided_slice %214 {offsets = [0, 32], sizes = [8, 32], strides = [1, 1]} : vector<8x128xf32> to vector<8x32xf32>
    %222 = arith.negf %221 : vector<8x32xf32>
    %223 = math.exp %222 : vector<8x32xf32>
    %cst_47 = arith.constant 1.000000e+00 : f32
    %224 = vector.broadcast %cst_47 : f32 to vector<8x32xf32>
    %225 = arith.addf %224, %223 : vector<8x32xf32>
    %226 = arith.divf %224, %225 : vector<8x32xf32>
    %227 = vector.extract_strided_slice %214 {offsets = [0, 64], sizes = [8, 32], strides = [1, 1]} : vector<8x128xf32> to vector<8x32xf32>
    %228 = math.tanh %227 : vector<8x32xf32>
    %229 = vector.extract_strided_slice %214 {offsets = [0, 96], sizes = [8, 32], strides = [1, 1]} : vector<8x128xf32> to vector<8x32xf32>
    %230 = arith.negf %229 : vector<8x32xf32>
    %231 = math.exp %230 : vector<8x32xf32>
    %cst_48 = arith.constant 1.000000e+00 : f32
    %232 = vector.broadcast %cst_48 : f32 to vector<8x32xf32>
    %233 = arith.addf %232, %231 : vector<8x32xf32>
    %234 = arith.divf %232, %233 : vector<8x32xf32>
    %235 = arith.mulf %226, %209 : vector<8x32xf32>
    %236 = arith.mulf %220, %228 : vector<8x32xf32>
    %237 = arith.addf %235, %236 : vector<8x32xf32>
    %238 = math.tanh %237 : vector<8x32xf32>
    %239 = arith.mulf %234, %238 : vector<8x32xf32>
    %240 = tpu.concatenate %43, %71, %99, %127, %155, %183, %211, %239 in 0 : vector<8x32xf32>, vector<8x32xf32>, vector<8x32xf32>, vector<8x32xf32>, vector<8x32xf32>, vector<8x32xf32>, vector<8x32xf32>, vector<8x32xf32> -> vector<64x32xf32>
    %c0_49 = arith.constant 0 : index
    %c0_50 = arith.constant 0 : index
    %241 = vector.load %arg9[%c0_49, %c0_50] : memref<32x4xf32, #tpu.memory_space<vmem>>, vector<32x4xf32>
    %cst_51 = arith.constant dense<0.000000e+00> : vector<64x4xf32>
    %242 = tpu.matmul %240, %241, %cst_51 {dimension_numbers = #tpu.dot_dimension_numbers<[1], [0], [0], [1], [0, 0, 1, 1], [], []>} : vector<64x32xf32>, vector<32x4xf32>, vector<64x4xf32> -> vector<64x4xf32>
    %c0_52 = arith.constant 0 : index
    %c0_53 = arith.constant 0 : index
    %243 = vector.load %arg10[%c0_52, %c0_53] : memref<1x4xf32, #tpu.memory_space<vmem>>, vector<1x4xf32>
    %244 = vector.broadcast %243 : vector<1x4xf32> to vector<64x4xf32>
    %245 = arith.addf %242, %244 : vector<64x4xf32>
    %c0_54 = arith.constant 0 : index
    %c0_55 = arith.constant 0 : index
    %246 = vector.load %arg11[%c0_54, %c0_55] : memref<64x4xf32, #tpu.memory_space<vmem>>, vector<64x4xf32>
    tpu.vector_store %arg11[%c0_54, %c0_55], %245 {strides = array<i32>} : memref<64x4xf32, #tpu.memory_space<vmem>>, vector<64x4xf32>,
    %c0_56 = arith.constant 0 : index
    %c0_57 = arith.constant 0 : index
    %247 = vector.load %arg12[%c0_56, %c0_57] : memref<8x32xf32, #tpu.memory_space<vmem>>, vector<8x32xf32>
    tpu.vector_store %arg12[%c0_56, %c0_57], %239 {strides = array<i32>} : memref<8x32xf32, #tpu.memory_space<vmem>>, vector<8x32xf32>,
    %c0_58 = arith.constant 0 : index
    %c0_59 = arith.constant 0 : index
    %248 = vector.load %arg13[%c0_58, %c0_59] : memref<8x32xf32, #tpu.memory_space<vmem>>, vector<8x32xf32>
    tpu.vector_store %arg13[%c0_58, %c0_59], %237 {strides = array<i32>} : memref<8x32xf32, #tpu.memory_space<vmem>>, vector<8x32xf32>,
    return
  }
  func.func @transform_0(%arg0: i32) -> (i32, i32) {
    %c0_i32 = arith.constant 0 : i32
    %c0_i32_0 = arith.constant 0 : i32
    return %arg0, %c0_i32 : i32, i32
  }
  func.func @transform_1(%arg0: i32) -> (i32, i32) {
    %c0_i32 = arith.constant 0 : i32
    %c0_i32_0 = arith.constant 0 : i32
    return %arg0, %c0_i32 : i32, i32
  }
  func.func @transform_2(%arg0: i32) -> (i32, i32) {
    %c0_i32 = arith.constant 0 : i32
    %c0_i32_0 = arith.constant 0 : i32
    return %arg0, %c0_i32 : i32, i32
  }
  func.func @transform_3(%arg0: i32) -> (i32, i32) {
    %c0_i32 = arith.constant 0 : i32
    %c0_i32_0 = arith.constant 0 : i32
    %c0_i32_1 = arith.constant 0 : i32
    return %c0_i32, %c0_i32_0 : i32, i32
  }
  func.func @transform_4(%arg0: i32) -> (i32, i32) {
    %c0_i32 = arith.constant 0 : i32
    %c0_i32_0 = arith.constant 0 : i32
    %c0_i32_1 = arith.constant 0 : i32
    return %c0_i32, %c0_i32_0 : i32, i32
  }
  func.func @transform_5(%arg0: i32) -> (i32, i32) {
    %c0_i32 = arith.constant 0 : i32
    %c0_i32_0 = arith.constant 0 : i32
    %c0_i32_1 = arith.constant 0 : i32
    return %c0_i32, %c0_i32_0 : i32, i32
  }
  func.func @transform_6(%arg0: i32) -> (i32, i32) {
    %c0_i32 = arith.constant 0 : i32
    %c0_i32_0 = arith.constant 0 : i32
    %c0_i32_1 = arith.constant 0 : i32
    return %c0_i32, %c0_i32_0 : i32, i32
  }
  func.func @transform_7(%arg0: i32) -> (i32, i32) {
    %c0_i32 = arith.constant 0 : i32
    %c0_i32_0 = arith.constant 0 : i32
    %c0_i32_1 = arith.constant 0 : i32
    return %c0_i32, %c0_i32_0 : i32, i32
  }
  func.func @transform_8(%arg0: i32) -> (i32, i32) {
    %c0_i32 = arith.constant 0 : i32
    %c0_i32_0 = arith.constant 0 : i32
    %c0_i32_1 = arith.constant 0 : i32
    return %c0_i32, %c0_i32_0 : i32, i32
  }
  func.func @transform_9(%arg0: i32) -> (i32, i32) {
    %c0_i32 = arith.constant 0 : i32
    %c0_i32_0 = arith.constant 0 : i32
    %c0_i32_1 = arith.constant 0 : i32
    return %c0_i32, %c0_i32_0 : i32, i32
  }
  func.func @transform_10(%arg0: i32) -> (i32, i32) {
    %c0_i32 = arith.constant 0 : i32
    %c0_i32_0 = arith.constant 0 : i32
    return %arg0, %c0_i32 : i32, i32
  }
  func.func @transform_11(%arg0: i32) -> (i32, i32) {
    %c0_i32 = arith.constant 0 : i32
    %c0_i32_0 = arith.constant 0 : i32
    return %arg0, %c0_i32 : i32, i32
  }
  func.func @transform_12(%arg0: i32) -> (i32, i32) {
    %c0_i32 = arith.constant 0 : i32
    %c0_i32_0 = arith.constant 0 : i32
    return %arg0, %c0_i32 : i32, i32
  }
}

</mosaic_0001>

<llo_original>
// kernel: tpu_custom_call.1
$region0: #{tpu_custom_call.1}
  #allocation0 [shape = 'u32[]', space=smem, size = 0x4, offset = 0x4, fixed_abs, tag = 'smem constant byte address 0x4 - core index']
  #allocation1 [shape = 'u32[144,128]{1,0:T(1,128)}', space=vmem, size = 0x12000, scoped, tag = 'internal scratch']
  %s0 = inlined_call_operand.vmem [shape: f32[128,140], index: 0, kind: input, shape index: {}]
  %s1 = inlined_call_operand.vmem [shape: f32[16,32], index: 1, kind: input, shape index: {}]
  %s2 = inlined_call_operand.vmem [shape: f32[16,32], index: 2, kind: input, shape index: {}]
  %s3 = inlined_call_operand.vmem [shape: f32[140,256], index: 3, kind: input, shape index: {}]
  %s4 = inlined_call_operand.vmem [shape: f32[1,256], index: 4, kind: input, shape index: {}]
  %s5 = inlined_call_operand.hbm [shape: f32[256,128], index: 5, kind: input, shape index: {}]
  %s6 = inlined_call_operand.vmem [shape: f32[1,128], index: 6, kind: input, shape index: {}]
  %s7 = inlined_call_operand.vmem [shape: f32[32,128], index: 7, kind: input, shape index: {}]
  %s8 = inlined_call_operand.vmem [shape: f32[32,4], index: 8, kind: input, shape index: {}]
  %s9 = inlined_call_operand.vmem [shape: f32[1,4], index: 9, kind: input, shape index: {}]
  %s10 = inlined_call_operand.vmem [shape: f32[128,4], index: 10, kind: output, shape index: {0}]
  %s11 = inlined_call_operand.hbm [shape: f32[16,32], index: 11, kind: output, shape index: {1}]
  %s12 = inlined_call_operand.hbm [shape: f32[16,32], index: 12, kind: output, shape index: {2}]
  %13 = xla_tuple %s10, %s11, %s12
  %s14 = sld [smem:[#allocation0]]
  $region93: #{tpu_custom_call.1} parent=0
    _
  %s16 = ssub.s32 1, %s14
  %s17 = scalar_select 0, %s16, %s14
  $region1: #{tpu_custom_call.1} parent=0
    #allocation2 [shape = 'u8[131072]{0}', space=vmem, size = 0x20000, scoped, tag = 'input window, operand 5, single buffered']
    #allocation3 [shape = 's32[2]{0}', space=sflag, size = 0x8, scoped, tag = 'scoped memory for tpu_custom_call.1']
    #allocation4 [shape = 's32[2]{0}', space=sflag, size = 0x8, scoped, tag = 'scoped memory for tpu_custom_call.1']
    #allocation5 [shape = 'u8[8192]{0}', space=vmem, size = 0x2000, scoped, tag = 'output window, operand 1']
    #allocation6 [shape = 'u8[8192]{0}', space=vmem, size = 0x2000, scoped, tag = 'output window, operand 2']
    #allocation7 [shape = 's32[2]{0}', space=sflag, size = 0x8, scoped, tag = 'scoped memory for tpu_custom_call.1']
    %18 = vsyncpa [#allocation3], 0
    %19 = vsyncpa [#allocation4], 0
    %s20 = scalar_lea.sflag [#allocation4], 1
    %21 = vsyncpa %s20, 0
    %22 = vsyncpa [#allocation7], 0
    %s23 = scalar_lea.sflag [#allocation7], 1
    %24 = vsyncpa %s23, 0
    loop: start=0, step=1, limit=4
    $region2: #{tpu_custom_call.1} parent=1 // loop_pre_header
      _
    $region3: #{tpu_custom_call.1} parent=1 // loop_header
      %s26 = sphi 0, %s30
      %p27 = scmp.ge.s32.totalorder %s26, 4
      %s36 = sphi 0, %s38
      %s39 = sphi 0, %s36
      %s40 = sphi 0, %s39
      %s56 = sphi 0, %s40
      %s62 = sphi 0, %s64
      %s65 = sphi 0, %s62
      %s66 = sphi 0, %s65
      %s82 = sphi 0, %s66
      %s88 = sphi 0, %s90
      %s91 = sphi 0, %s88
      %s92 = sphi 0, %s91
      %s108 = sphi 0, %s92
      %s112 = sphi 0, %s112
      %s114 = sphi 0, %s112
      %s115 = sphi 0, %s114
      %s129 = sphi 0, %s115
      %s133 = sphi 0, %s133
      %s135 = sphi 0, %s133
      %s136 = sphi 0, %s135
      %s150 = sphi 0, %s136
      %s154 = sphi 0, %s154
      %s156 = sphi 0, %s154
      %s157 = sphi 0, %s156
      %s171 = sphi 0, %s157
      %s175 = sphi 0, %s175
      %s177 = sphi 0, %s175
      %s178 = sphi 0, %s177
      %s192 = sphi 0, %s178
      %s196 = sphi 0, %s196
      %s198 = sphi 0, %s196
      %s199 = sphi 0, %s198
      %s213 = sphi 0, %s199
      %s217 = sphi 0, %s217
      %s219 = sphi 0, %s217
      %s220 = sphi 0, %s219
      %s234 = sphi 0, %s220
      %s238 = sphi 0, %s238
      %s240 = sphi 0, %s238
      %s241 = sphi 0, %s240
      %s255 = sphi 0, %s241
      %s261 = sphi 0, %s263
      %s264 = sphi 0, %s261
      %s265 = sphi 0, %s264
      %s281 = sphi 0, %s265
      %s287 = sphi 0, %s289
      %s290 = sphi 0, %s287
      %s291 = sphi 0, %s290
      %s307 = sphi 0, %s291
      %s313 = sphi 0, %s315
      %s316 = sphi 0, %s313
      %s317 = sphi 0, %s316
      %s333 = sphi 0, %s317
    $region4: #{tpu_custom_call.1} parent=1 // loop_header_branch
      %29 = sbr.rel (%p27) target = $region8
    $region5: #{tpu_custom_call.1} parent=1 // loop_body
      %s31 = ssub.s32 %s26, 1
      %s32 = ssub.s32 %s26, 2
      %s33 = sadd.s32 %s26, 1
      %s34 = ssub.s32 %s26, %s33
      %p35 = scmp.eq.s32.totalorder %s34, 0
      %s37 = sadd.s32 %s36, 1
      %s38 = scalar_select %p35, %s36, %s37
      %p41 = pneg %p35
      %p42 = scmp.eq.s32.totalorder %s26, 1
      %p43 = por %p41, %p42
      %p44 = scmp.ne.s32.totalorder %s36, %s39
      %p45 = scmp.eq.s32.totalorder %s26, 0
      %p46 = por %p44, %p45
      %p47 = scmp.ne.s32.totalorder %s36, %s39
      %p48 = scmp.eq.s32.totalorder %s31, 1
      %p49 = por %p47, %p48
      %p50 = scmp.ne.s32.totalorder %s39, %s40
      %p51 = scmp.eq.s32.totalorder %s31, 0
      %p52 = por %p50, %p51
      %p53 = scmp.ne.s32.totalorder %s39, %s40
      %p54 = scmp.eq.s32.totalorder %s32, 1
      %p55 = por %p53, %p54
      %p57 = scmp.ne.s32.totalorder %s40, %s56
      %p58 = scmp.eq.s32.totalorder %s32, 0
      %p59 = por %p57, %p58
      %s60 = ssub.s32 %s26, %s33
      %p61 = scmp.eq.s32.totalorder %s60, 0
      %s63 = sadd.s32 %s62, 1
      %s64 = scalar_select %p61, %s62, %s63
      %p67 = pneg %p61
      %p68 = scmp.eq.s32.totalorder %s26, 1
      %p69 = por %p67, %p68
      %p70 = scmp.ne.s32.totalorder %s62, %s65
      %p71 = scmp.eq.s32.totalorder %s26, 0
      %p72 = por %p70, %p71
      %p73 = scmp.ne.s32.totalorder %s62, %s65
      %p74 = scmp.eq.s32.totalorder %s31, 1
      %p75 = por %p73, %p74
      %p76 = scmp.ne.s32.totalorder %s65, %s66
      %p77 = scmp.eq.s32.totalorder %s31, 0
      %p78 = por %p76, %p77
      %p79 = scmp.ne.s32.totalorder %s65, %s66
      %p80 = scmp.eq.s32.totalorder %s32, 1
      %p81 = por %p79, %p80
      %p83 = scmp.ne.s32.totalorder %s66, %s82
      %p84 = scmp.eq.s32.totalorder %s32, 0
      %p85 = por %p83, %p84
      %s86 = ssub.s32 %s26, %s33
      %p87 = scmp.eq.s32.totalorder %s86, 0
      %s89 = sadd.s32 %s88, 1
      %s90 = scalar_select %p87, %s88, %s89
      %p93 = pneg %p87
      %p94 = scmp.eq.s32.totalorder %s26, 1
      %p95 = por %p93, %p94
      %p96 = scmp.ne.s32.totalorder %s88, %s91
      %p97 = scmp.eq.s32.totalorder %s26, 0
      %p98 = por %p96, %p97
      %p99 = scmp.ne.s32.totalorder %s88, %s91
      %p100 = scmp.eq.s32.totalorder %s31, 1
      %p101 = por %p99, %p100
      %p102 = scmp.ne.s32.totalorder %s91, %s92
      %p103 = scmp.eq.s32.totalorder %s31, 0
      %p104 = por %p102, %p103
      %p105 = scmp.ne.s32.totalorder %s91, %s92
      %p106 = scmp.eq.s32.totalorder %s32, 1
      %p107 = por %p105, %p106
      %p109 = scmp.ne.s32.totalorder %s92, %s108
      %p110 = scmp.eq.s32.totalorder %s32, 0
      %p111 = por %p109, %p110
      %s113 = sadd.s32 %s112, 1
      %p116 = scmp.eq.s32.totalorder %s26, 1
      %p117 = scmp.ne.s32.totalorder %s112, %s114
      %p118 = scmp.eq.s32.totalorder %s26, 0
      %p119 = por %p117, %p118
      %p120 = scmp.ne.s32.totalorder %s112, %s114
      %p121 = scmp.eq.s32.totalorder %s31, 1
      %p122 = por %p120, %p121
      %p123 = scmp.ne.s32.totalorder %s114, %s115
      %p124 = scmp.eq.s32.totalorder %s31, 0
      %p125 = por %p123, %p124
      %p126 = scmp.ne.s32.totalorder %s114, %s115
      %p127 = scmp.eq.s32.totalorder %s32, 1
      %p128 = por %p126, %p127
      %p130 = scmp.ne.s32.totalorder %s115, %s129
      %p131 = scmp.eq.s32.totalorder %s32, 0
      %p132 = por %p130, %p131
      %s134 = sadd.s32 %s133, 1
      %p137 = scmp.eq.s32.totalorder %s26, 1
      %p138 = scmp.ne.s32.totalorder %s133, %s135
      %p139 = scmp.eq.s32.totalorder %s26, 0
      %p140 = por %p138, %p139
      %p141 = scmp.ne.s32.totalorder %s133, %s135
      %p142 = scmp.eq.s32.totalorder %s31, 1
      %p143 = por %p141, %p142
      %p144 = scmp.ne.s32.totalorder %s135, %s136
      %p145 = scmp.eq.s32.totalorder %s31, 0
      %p146 = por %p144, %p145
      %p147 = scmp.ne.s32.totalorder %s135, %s136
      %p148 = scmp.eq.s32.totalorder %s32, 1
      %p149 = por %p147, %p148
      %p151 = scmp.ne.s32.totalorder %s136, %s150
      %p152 = scmp.eq.s32.totalorder %s32, 0
      %p153 = por %p151, %p152
      %s155 = sadd.s32 %s154, 1
      %p158 = scmp.eq.s32.totalorder %s26, 1
      %p159 = scmp.ne.s32.totalorder %s154, %s156
      %p160 = scmp.eq.s32.totalorder %s26, 0
      %p161 = por %p159, %p160
      %p162 = scmp.ne.s32.totalorder %s154, %s156
      %p163 = scmp.eq.s32.totalorder %s31, 1
      %p164 = por %p162, %p163
      %p165 = scmp.ne.s32.totalorder %s156, %s157
      %p166 = scmp.eq.s32.totalorder %s31, 0
      %p167 = por %p165, %p166
      %p168 = scmp.ne.s32.totalorder %s156, %s157
      %p169 = scmp.eq.s32.totalorder %s32, 1
      %p170 = por %p168, %p169
      %p172 = scmp.ne.s32.totalorder %s157, %s171
      %p173 = scmp.eq.s32.totalorder %s32, 0
      %p174 = por %p172, %p173
      %s176 = sadd.s32 %s175, 1
      %p179 = scmp.eq.s32.totalorder %s26, 1
      %p180 = scmp.ne.s32.totalorder %s175, %s177
      %p181 = scmp.eq.s32.totalorder %s26, 0
      %p182 = por %p180, %p181
      %p183 = scmp.ne.s32.totalorder %s175, %s177
      %p184 = scmp.eq.s32.totalorder %s31, 1
      %p185 = por %p183, %p184
      %p186 = scmp.ne.s32.totalorder %s177, %s178
      %p187 = scmp.eq.s32.totalorder %s31, 0
      %p188 = por %p186, %p187
      %p189 = scmp.ne.s32.totalorder %s177, %s178
      %p190 = scmp.eq.s32.totalorder %s32, 1
      %p191 = por %p189, %p190
      %p193 = scmp.ne.s32.totalorder %s178, %s192
      %p194 = scmp.eq.s32.totalorder %s32, 0
      %p195 = por %p193, %p194
      %s197 = sadd.s32 %s196, 1
      %p200 = scmp.eq.s32.totalorder %s26, 1
      %p201 = scmp.ne.s32.totalorder %s196, %s198
      %p202 = scmp.eq.s32.totalorder %s26, 0
      %p203 = por %p201, %p202
      %p204 = scmp.ne.s32.totalorder %s196, %s198
      %p205 = scmp.eq.s32.totalorder %s31, 1
      %p206 = por %p204, %p205
      %p207 = scmp.ne.s32.totalorder %s198, %s199
      %p208 = scmp.eq.s32.totalorder %s31, 0
      %p209 = por %p207, %p208
      %p210 = scmp.ne.s32.totalorder %s198, %s199
      %p211 = scmp.eq.s32.totalorder %s32, 1
      %p212 = por %p210, %p211
      %p214 = scmp.ne.s32.totalorder %s199, %s213
      %p215 = scmp.eq.s32.totalorder %s32, 0
      %p216 = por %p214, %p215
      %s218 = sadd.s32 %s217, 1
      %p221 = scmp.eq.s32.totalorder %s26, 1
      %p222 = scmp.ne.s32.totalorder %s217, %s219
      %p223 = scmp.eq.s32.totalorder %s26, 0
      %p224 = por %p222, %p223
      %p225 = scmp.ne.s32.totalorder %s217, %s219
      %p226 = scmp.eq.s32.totalorder %s31, 1
      %p227 = por %p225, %p226
      %p228 = scmp.ne.s32.totalorder %s219, %s220
      %p229 = scmp.eq.s32.totalorder %s31, 0
      %p230 = por %p228, %p229
      %p231 = scmp.ne.s32.totalorder %s219, %s220
      %p232 = scmp.eq.s32.totalorder %s32, 1
      %p233 = por %p231, %p232
      %p235 = scmp.ne.s32.totalorder %s220, %s234
      %p236 = scmp.eq.s32.totalorder %s32, 0
      %p237 = por %p235, %p236
      %s239 = sadd.s32 %s238, 1
      %p242 = scmp.eq.s32.totalorder %s26, 1
      %p243 = scmp.ne.s32.totalorder %s238, %s240
      %p244 = scmp.eq.s32.totalorder %s26, 0
      %p245 = por %p243, %p244
      %p246 = scmp.ne.s32.totalorder %s238, %s240
      %p247 = scmp.eq.s32.totalorder %s31, 1
      %p248 = por %p246, %p247
      %p249 = scmp.ne.s32.totalorder %s240, %s241
      %p250 = scmp.eq.s32.totalorder %s31, 0
      %p251 = por %p249, %p250
      %p252 = scmp.ne.s32.totalorder %s240, %s241
      %p253 = scmp.eq.s32.totalorder %s32, 1
      %p254 = por %p252, %p253
      %p256 = scmp.ne.s32.totalorder %s241, %s255
      %p257 = scmp.eq.s32.totalorder %s32, 0
      %p258 = por %p256, %p257
      %s259 = ssub.s32 %s26, %s33
      %p260 = scmp.eq.s32.totalorder %s259, 0
      %s262 = sadd.s32 %s261, 1
      %s263 = scalar_select %p260, %s261, %s262
      %p266 = pneg %p260
      %p267 = scmp.eq.s32.totalorder %s26, 1
      %p268 = por %p266, %p267
      %p269 = scmp.ne.s32.totalorder %s261, %s264
      %p270 = scmp.eq.s32.totalorder %s26, 0
      %p271 = por %p269, %p270
      %p272 = scmp.ne.s32.totalorder %s261, %s264
      %p273 = scmp.eq.s32.totalorder %s31, 1
      %p274 = por %p272, %p273
      %p275 = scmp.ne.s32.totalorder %s264, %s265
      %p276 = scmp.eq.s32.totalorder %s31, 0
      %p277 = por %p275, %p276
      %p278 = scmp.ne.s32.totalorder %s264, %s265
      %p279 = scmp.eq.s32.totalorder %s32, 1
      %p280 = por %p278, %p279
      %p282 = scmp.ne.s32.totalorder %s265, %s281
      %p283 = scmp.eq.s32.totalorder %s32, 0
      %p284 = por %p282, %p283
      %s285 = ssub.s32 %s26, %s33
      %p286 = scmp.eq.s32.totalorder %s285, 0
      %s288 = sadd.s32 %s287, 1
      %s289 = scalar_select %p286, %s287, %s288
      %p292 = pneg %p286
      %p293 = scmp.eq.s32.totalorder %s26, 1
      %p294 = por %p292, %p293
      %p295 = scmp.ne.s32.totalorder %s287, %s290
      %p296 = scmp.eq.s32.totalorder %s26, 0
      %p297 = por %p295, %p296
      %p298 = scmp.ne.s32.totalorder %s287, %s290
      %p299 = scmp.eq.s32.totalorder %s31, 1
      %p300 = por %p298, %p299
      %p301 = scmp.ne.s32.totalorder %s290, %s291
      %p302 = scmp.eq.s32.totalorder %s31, 0
      %p303 = por %p301, %p302
      %p304 = scmp.ne.s32.totalorder %s290, %s291
      %p305 = scmp.eq.s32.totalorder %s32, 1
      %p306 = por %p304, %p305
      %p308 = scmp.ne.s32.totalorder %s291, %s307
      %p309 = scmp.eq.s32.totalorder %s32, 0
      %p310 = por %p308, %p309
      %s311 = ssub.s32 %s26, %s33
      %p312 = scmp.eq.s32.totalorder %s311, 0
      %s314 = sadd.s32 %s313, 1
      %s315 = scalar_select %p312, %s313, %s314
      %p318 = pneg %p312
      %p319 = scmp.eq.s32.totalorder %s26, 1
      %p320 = por %p318, %p319
      %p321 = scmp.ne.s32.totalorder %s313, %s316
      %p322 = scmp.eq.s32.totalorder %s26, 0
      %p323 = por %p321, %p322
      %p324 = scmp.ne.s32.totalorder %s313, %s316
      %p325 = scmp.eq.s32.totalorder %s31, 1
      %p326 = por %p324, %p325
      %p327 = scmp.ne.s32.totalorder %s316, %s317
      %p328 = scmp.eq.s32.totalorder %s31, 0
      %p329 = por %p327, %p328
      %p330 = scmp.ne.s32.totalorder %s316, %s317
      %p331 = scmp.eq.s32.totalorder %s32, 1
      %p332 = por %p330, %p331
      %p334 = scmp.ne.s32.totalorder %s317, %s333
      %p335 = scmp.eq.s32.totalorder %s32, 0
      %p336 = por %p334, %p335
      %p337 = scmp.le.s32.totalorder 1, %s26
      %p338 = scmp.lt.s32.totalorder %s26, 3
      %p339 = pnand %p337, %p338
      %p340 = pneg %p339
      // Predicated region
      $region9: #{tpu_custom_call.1} parent=5 // pred_check
        _
      $region10: #{tpu_custom_call.1} parent=5 // pred_check_branch
        %342 = sbr.rel (%p339) target = $region12
      $region11: #{tpu_custom_call.1} parent=5 // pred_region
        %s343 = ssub.s32 %s26, 1
        // Predicated region
        $region13: #{tpu_custom_call.1} parent=11 // pred_check
          %p344 = pneg %p125
        $region14: #{tpu_custom_call.1} parent=11 // pred_check_branch
          %346 = sbr.rel (%p344) target = $region16
        $region15: #{tpu_custom_call.1} parent=11 // pred_region
          _
        $region16: #{tpu_custom_call.1} parent=11 // pred_fallthru
          _
        // Predicated region
        $region17: #{tpu_custom_call.1} parent=11 // pred_check
          %p347 = pneg %p146
        $region18: #{tpu_custom_call.1} parent=11 // pred_check_branch
          %349 = sbr.rel (%p347) target = $region20
        $region19: #{tpu_custom_call.1} parent=11 // pred_region
          _
        $region20: #{tpu_custom_call.1} parent=11 // pred_fallthru
          _
        // Predicated region
        $region21: #{tpu_custom_call.1} parent=11 // pred_check
          %p350 = pneg %p167
        $region22: #{tpu_custom_call.1} parent=11 // pred_check_branch
          %352 = sbr.rel (%p350) target = $region24
        $region23: #{tpu_custom_call.1} parent=11 // pred_region
          %s354 = ssub.s32 4096, 4096
          %355 = vsyncadd [#allocation3], %s354
          %s356 = sshll.u32 [#allocation2], 4
          %s357 = int_to_ptr.vmem [resolvable:$true] %s356
          %362 = dma.hbm_to_vmem [thread:$0]  %s5, 4096, %s357, [#allocation3], 128, 128, 8
        $region24: #{tpu_custom_call.1} parent=11 // pred_fallthru
          _
        // Predicated region
        $region25: #{tpu_custom_call.1} parent=11 // pred_check
          %p363 = pneg %p188
        $region26: #{tpu_custom_call.1} parent=11 // pred_check_branch
          %365 = sbr.rel (%p363) target = $region28
        $region27: #{tpu_custom_call.1} parent=11 // pred_region
          _
        $region28: #{tpu_custom_call.1} parent=11 // pred_fallthru
          _
        // Predicated region
        $region29: #{tpu_custom_call.1} parent=11 // pred_check
          %p366 = pneg %p209
        $region30: #{tpu_custom_call.1} parent=11 // pred_check_branch
          %368 = sbr.rel (%p366) target = $region32
        $region31: #{tpu_custom_call.1} parent=11 // pred_region
          _
        $region32: #{tpu_custom_call.1} parent=11 // pred_fallthru
          _
        // Predicated region
        $region33: #{tpu_custom_call.1} parent=11 // pred_check
          %p369 = pneg %p230
        $region34: #{tpu_custom_call.1} parent=11 // pred_check_branch
          %371 = sbr.rel (%p369) target = $region36
        $region35: #{tpu_custom_call.1} parent=11 // pred_region
          _
        $region36: #{tpu_custom_call.1} parent=11 // pred_fallthru
          _
        // Predicated region
        $region37: #{tpu_custom_call.1} parent=11 // pred_check
          %p372 = pneg %p251
        $region38: #{tpu_custom_call.1} parent=11 // pred_check_branch
          %374 = sbr.rel (%p372) target = $region40
        $region39: #{tpu_custom_call.1} parent=11 // pred_region
          _
        $region40: #{tpu_custom_call.1} parent=11 // pred_fallthru
          _
      $region12: #{tpu_custom_call.1} parent=5 // pred_fallthru
        _
      %p375 = scmp.lt.s32.totalorder %s26, 2
      // Predicated region
      $region41: #{tpu_custom_call.1} parent=5 // pred_check
        %p376 = pneg %p375
      $region42: #{tpu_custom_call.1} parent=5 // pred_check_branch
        %378 = sbr.rel (%p376) target = $region44
      $region43: #{tpu_custom_call.1} parent=5 // pred_region
        // Predicated region
        $region45: #{tpu_custom_call.1} parent=43 // pred_check
          %p379 = pneg %p46
        $region46: #{tpu_custom_call.1} parent=43 // pred_check_branch
          %381 = sbr.rel (%p379) target = $region48
        $region47: #{tpu_custom_call.1} parent=43 // pred_region
          %s382 = smul.u32 8, %s26
          %p383 = scmp.lt.s32.totalorder %s382, 15
          %s384 = scalar_select %p383, %s382, 15
          %s385 = smul.addr %s384, 2
          %s386 = smul.addr %s385, 8
          %s387 = scalar_lea.vmem %s0, %s386
          %s388 = smul.u32 8, %s26
        $region48: #{tpu_custom_call.1} parent=43 // pred_fallthru
          _
        // Predicated region
        $region49: #{tpu_custom_call.1} parent=43 // pred_check
          %p389 = pneg %p72
        $region50: #{tpu_custom_call.1} parent=43 // pred_check_branch
          %391 = sbr.rel (%p389) target = $region52
        $region51: #{tpu_custom_call.1} parent=43 // pred_region
          %p392 = scmp.lt.s32.totalorder %s26, 1
          %s393 = scalar_select %p392, %s26, 1
          %s394 = smul.addr %s393, 8
          %s395 = scalar_lea.vmem %s1, %s394
        $region52: #{tpu_custom_call.1} parent=43 // pred_fallthru
          _
        // Predicated region
        $region53: #{tpu_custom_call.1} parent=43 // pred_check
          %p396 = pneg %p98
        $region54: #{tpu_custom_call.1} parent=43 // pred_check_branch
          %398 = sbr.rel (%p396) target = $region56
        $region55: #{tpu_custom_call.1} parent=43 // pred_region
          %p399 = scmp.lt.s32.totalorder %s26, 1
          %s400 = scalar_select %p399, %s26, 1
          %s401 = smul.addr %s400, 8
          %s402 = scalar_lea.vmem %s2, %s401
        $region56: #{tpu_custom_call.1} parent=43 // pred_fallthru
          _
      $region44: #{tpu_custom_call.1} parent=5 // pred_fallthru
        _
      %p403 = scmp.le.s32.totalorder 1, %s26
      %p404 = scmp.lt.s32.totalorder %s26, 3
      %p405 = pnand %p403, %p404
      %p406 = pneg %p405
      // Predicated region
      $region57: #{tpu_custom_call.1} parent=5 // pred_check
        _
      $region58: #{tpu_custom_call.1} parent=5 // pred_check_branch
        %408 = sbr.rel (%p405) target = $region60
      $region59: #{tpu_custom_call.1} parent=5 // pred_region
        %s409 = ssub.s32 %s26, 1
        // Predicated region
        $region61: #{tpu_custom_call.1} parent=59 // pred_check
          %p410 = pneg %p167
        $region62: #{tpu_custom_call.1} parent=59 // pred_check_branch
          %412 = sbr.rel (%p410) target = $region64
        $region63: #{tpu_custom_call.1} parent=59 // pred_region
          %413 = dma.done [#allocation3], 4096
        $region64: #{tpu_custom_call.1} parent=59 // pred_fallthru
          _
        %s414 = smul.u32 8, %s31
        %p415 = scmp.lt.s32.totalorder %s414, 15
        %s416 = scalar_select %p415, %s414, 15
        %s417 = smul.addr %s416, 2
        %s418 = smul.addr %s417, 8
        %s419 = scalar_lea.vmem %s0, %s418
        %p420 = pneg %p52
        %p421 = pneg %p49
        %p422 = scmp.lt.s32.totalorder %s31, 1
        %s423 = scalar_select %p422, %s31, 1
        %s424 = smul.addr %s423, 8
        %s425 = scalar_lea.vmem %s1, %s424
        %p426 = pneg %p78
        %p427 = pneg %p75
        %p428 = scmp.lt.s32.totalorder %s31, 1
        %s429 = scalar_select %p428, %s31, 1
        %s430 = smul.addr %s429, 8
        %s431 = scalar_lea.vmem %s2, %s430
        %p432 = pneg %p104
        %p433 = pneg %p101
        %p434 = pneg %p125
        %p435 = pneg %p122
        %p436 = pneg %p146
        %p437 = pneg %p143
        %p438 = pneg %p167
        %p439 = pneg %p164
        %p440 = pneg %p188
        %p441 = pneg %p185
        %p442 = pneg %p209
        %p443 = pneg %p206
        %p444 = pneg %p230
        %p445 = pneg %p227
        %p446 = pneg %p251
        %p447 = pneg %p248
        %p448 = pneg %p277
        %p449 = pneg %p274
        %s450 = smul.u32 8, %s31
        %p451 = scmp.lt.s32.totalorder %s450, 15
        %s452 = scalar_select %p451, %s450, 15
        %s453 = smul.addr %s452, 8
        %s454 = scalar_lea.vmem %s10, %s453
        %p455 = pneg %p303
        %p456 = pneg %p300
        %s457 = sand.u32 %s290, 1
        %s458 = scalar_lea.sflag [#allocation4], %s457
        %s459 = sand.u32 %s290, 1
        %s460 = smul.addr %s459, 8
        %s461 = scalar_lea.vmem [#allocation5], %s460
        %p462 = pneg %p329
        %p463 = pneg %p326
        %s464 = sand.u32 %s316, 1
        %s465 = scalar_lea.sflag [#allocation7], %s464
        %s466 = sand.u32 %s316, 1
        %s467 = smul.addr %s466, 8
        %s468 = scalar_lea.vmem [#allocation6], %s467
        %s469 = smul.u32 8, %s31
        %p470 = scmp.lt.s32.totalorder %s469, 15
        %s471 = scalar_select %p470, %s469, 15
        %s472 = smul.addr %s471, 2
        %s473 = smul.addr %s472, 8
        %s474 = scalar_lea.vmem %s0, %s473
        %s475 = smul.u32 8, %s31
        %p476 = scmp.lt.s32.totalorder %s31, 1
        %s477 = scalar_select %p476, %s31, 1
        %s478 = smul.addr %s477, 8
        %s479 = scalar_lea.vmem %s1, %s478
        %p480 = scmp.lt.s32.totalorder %s31, 1
        %s481 = scalar_select %p480, %s31, 1
        %s482 = smul.addr %s481, 8
        %s483 = scalar_lea.vmem %s2, %s482
        %s484 = smul.u32 8, %s31
        %p485 = scmp.lt.s32.totalorder %s484, 15
        %s486 = scalar_select %p485, %s484, 15
        %s487 = smul.addr %s486, 8
        %s488 = scalar_lea.vmem %s10, %s487
        %s489 = smul.u32 8, %s31
        %v490 = vld [vmem:[%s3] sm:$0xff]
        %v491 = vld [vmem:[%s3 + $0x8] sm:$0xff]
        %v492 = vld [vmem:[%s3 + $0x10] sm:$0xff]
        %v493 = vld [vmem:[%s3 + $0x18] sm:$0xff]
        %v494 = vld [vmem:[%s3 + $0x20] sm:$0xff]
        %v495 = vld [vmem:[%s3 + $0x28] sm:$0xff]
        %v496 = vld [vmem:[%s3 + $0x30] sm:$0xff]
        %v497 = vld [vmem:[%s3 + $0x38] sm:$0xff]
        %v498 = vld [vmem:[%s3 + $0x40] sm:$0xff]
        %v499 = vld [vmem:[%s3 + $0x48] sm:$0xff]
        %v500 = vld [vmem:[%s3 + $0x50] sm:$0xff]
        %v501 = vld [vmem:[%s3 + $0x58] sm:$0xff]
        %v502 = vld [vmem:[%s3 + $0x60] sm:$0xff]
        %v503 = vld [vmem:[%s3 + $0x68] sm:$0xff]
        %v504 = vld [vmem:[%s3 + $0x70] sm:$0xff]
        %v505 = vld [vmem:[%s3 + $0x78] sm:$0xff]
        %v506 = vld [vmem:[%s3 + $0x80] sm:$0xff]
        %v507 = vld [vmem:[%s3 + $0x88] sm:$0xff]
        %v508 = vld [vmem:[%s3 + $0x90] sm:$0xff]
        %v509 = vld [vmem:[%s3 + $0x98] sm:$0xff]
        %v510 = vld [vmem:[%s3 + $0xa0] sm:$0xff]
        %v511 = vld [vmem:[%s3 + $0xa8] sm:$0xff]
        %v512 = vld [vmem:[%s3 + $0xb0] sm:$0xff]
        %v513 = vld [vmem:[%s3 + $0xb8] sm:$0xff]
        %v514 = vld [vmem:[%s3 + $0xc0] sm:$0xff]
        %v515 = vld [vmem:[%s3 + $0xc8] sm:$0xff]
        %v516 = vld [vmem:[%s3 + $0xd0] sm:$0xff]
        %v517 = vld [vmem:[%s3 + $0xd8] sm:$0xff]
        %v518 = vld [vmem:[%s3 + $0xe0] sm:$0xff]
        %v519 = vld [vmem:[%s3 + $0xe8] sm:$0xff]
        %v520 = vld [vmem:[%s3 + $0xf0] sm:$0xff]
        %v521 = vld [vmem:[%s3 + $0xf8] sm:$0xff]
        %v522 = vld [vmem:[%s3 + $0x100] sm:$0xff]
        %v523 = vld [vmem:[%s3 + $0x108] sm:$0xff]
        %v524 = vld [vmem:[%s3 + $0x110] sm:$0xf]
        %v525 = vld [vmem:[%s3 + $0x118] sm:$0xf]
        %v526 = vld [vmem:[%s474] sm:$0xff]
        %v527 = vld [vmem:[%s474 + $0x8] sm:$0xff]
        %v528 = vld [vmem:[%s474 + $0x10] sm:$0xff]
        %v529 = vld [vmem:[%s474 + $0x18] sm:$0xff]
        %v530 = vld [vmem:[%s474 + $0x20] sm:$0xff]
        %v531 = vld [vmem:[%s474 + $0x28] sm:$0xff]
        %v532 = vld [vmem:[%s474 + $0x30] sm:$0xff]
        %v533 = vld [vmem:[%s474 + $0x38] sm:$0xff]
        %v534 = vld [vmem:[%s474 + $0x40] sm:$0xff]
        %v535 = vld [vmem:[%s474 + $0x48] sm:$0xff]
        %v536 = vld [vmem:[%s474 + $0x50] sm:$0xff]
        %v537 = vld [vmem:[%s474 + $0x58] sm:$0xff]
        %v538 = vld [vmem:[%s474 + $0x60] sm:$0xff]
        %v539 = vld [vmem:[%s474 + $0x68] sm:$0xff]
        %v540 = vld [vmem:[%s474 + $0x70] sm:$0xff]
        %v541 = vld [vmem:[%s474 + $0x78] sm:$0xff]
        %v542 = vld [vmem:[%s4] sm:$0x3]
        %v544 = vlaneseq
        %v545 = vshrl.u32 %v544, 7
        %v546 = vsub.s32 0, %v545
        %v547 = vrot.slane %v542, %v546
        %v548 = vlaneseq
        %v549 = vshrl.u32 %v548, 7
        %v550 = vsub.s32 1, %v549
        %v551 = vrot.slane %v542, %v550
        %vm554 = vcmask 97280
        %v556 = vsel %vm554, %v527, 0
        %v559 = vsel %vm554, %v529, 0
        %v562 = vsel %vm554, %v531, 0
        %v565 = vsel %vm554, %v533, 0
        %v568 = vsel %vm554, %v535, 0
        %v571 = vsel %vm554, %v537, 0
        %v574 = vsel %vm554, %v539, 0
        %v577 = vsel %vm554, %v541, 0
        %vm579 = vcmask 1043456
        %v581 = vsel %vm579, %v524, 0
        %v584 = vsel %vm579, %v525, 0
        %586 = vmatprep.subr.mxu0 %v491
        %587 = vmatpush1.msra.mxu0 %v490
        %588 = vmatprep.subr.mxu0 %v493
        %589 = vmatpush1.msra.mxu0 %v492
        %590 = vmatprep.subr.mxu0 %v495
        %591 = vmatpush1.msra.mxu0 %v494
        %592 = vmatprep.subr.mxu0 %v497
        %593 = vmatpush1.msra.mxu0 %v496
        %594 = vmatprep.subr.mxu0 %v499
        %595 = vmatpush1.msra.mxu0 %v498
        %596 = vmatprep.subr.mxu0 %v501
        %597 = vmatpush1.msra.mxu0 %v500
        %598 = vmatprep.subr.mxu0 %v503
        %599 = vmatpush1.msra.mxu0 %v502
        %600 = vmatprep.subr.mxu0 %v505
        %601 = vmatpush1.msra.mxu0 %v504
        %602 = vmatprep.subr.mxu0 %v507
        %603 = vmatpush1.msra.mxu0 %v506
        %604 = vmatprep.subr.mxu0 %v509
        %605 = vmatpush1.msra.mxu0 %v508
        %606 = vmatprep.subr.mxu0 %v511
        %607 = vmatpush1.msra.mxu0 %v510
        %608 = vmatprep.subr.mxu0 %v513
        %609 = vmatpush1.msra.mxu0 %v512
        %610 = vmatprep.subr.mxu0 %v515
        %611 = vmatpush1.msra.mxu0 %v514
        %612 = vmatprep.subr.mxu0 %v517
        %613 = vmatpush1.msra.mxu0 %v516
        %614 = vmatprep.subr.mxu0 %v519
        %615 = vmatpush1.msra.mxu0 %v518
        %616 = vmatprep.subr.mxu0 %v521
        %617 = vmatpush1.msra.mxu0 %v520
        %618 = vmatprep.subr.mxu0 %v523
        %619 = vmatpush1.msra.mxu0 %v522
        %620 = vmatprep.subr.mxu0 %v584
        %621 = vmatpush1.msra.mxu0 %v581
        %622 = vmatprep.subr.mxu0 0.0
        %623 = vmatpush1.msra.mxu0 0.0
        %624 = vmatprep.subr.mxu0 0.0
        %625 = vmatpush1.msra.mxu0 0.0
        %626 = vmatprep.subr.mxu0 0.0
        %627 = vmatpush1.msra.mxu0 0.0
        %628 = vmatprep.subr.mxu0 0.0
        %629 = vmatpush1.msra.mxu0 0.0
        %630 = vmatprep.subr.mxu0 0.0
        %631 = vmatpush1.msra.mxu0 0.0
        %632 = vmatprep.subr.mxu0 0.0
        %633 = vmatpush1.msra.mxu0 0.0
        %634 = vmatprep.subr.mxu0 0.0
        %635 = vmatpush1.msra.mxu0 0.0
        %636 = vmatprep.subr.mxu0 0.0
        %637 = vmatpush1.msra.mxu0 0.0
        %638 = vmatprep.subr.mxu0 0.0
        %639 = vmatpush1.msra.mxu0 0.0
        %640 = vmatprep.subr.mxu0 0.0
        %641 = vmatpush1.msra.mxu0 0.0
        %642 = vmatprep.subr.mxu0 0.0
        %643 = vmatpush1.msra.mxu0 0.0
        %644 = vmatprep.subr.mxu0 0.0
        %645 = vmatpush1.msra.mxu0 0.0
        %646 = vmatprep.subr.mxu0 0.0
        %647 = vmatpush1.msra.mxu0 0.0
        %648 = vmatprep.subr.mxu0 0.0
        %649 = vmatpush1.msra.mxu0 0.0
        %650 = vmatprep.mubr.f32.mxu0 %v556
        %651 = vmatmul.mubr.f32.gmra.mrb[0].mxu0 %v526
        %v652 = vpop.f32.mrb[0].mxu0
        %v653 = vadd.f32 %v547, %v652
        %v654 = vpop.f32.mrb[0].mxu0
        %v655 = vadd.f32 %v551, %v654
        %656 = vmatprep.mubr.f32.mxu0 %v559
        %657 = vmatmul.mubr.f32.gmra.mrb[0].mxu0 %v528
        %v658 = vpop.f32.mrb[0].mxu0
        %v659 = vadd.f32 %v547, %v658
        %v660 = vpop.f32.mrb[0].mxu0
        %v661 = vadd.f32 %v551, %v660
        %662 = vmatprep.mubr.f32.mxu0 %v562
        %663 = vmatmul.mubr.f32.gmra.mrb[0].mxu0 %v530
        %v664 = vpop.f32.mrb[0].mxu0
        %v665 = vadd.f32 %v547, %v664
        %v666 = vpop.f32.mrb[0].mxu0
        %v667 = vadd.f32 %v551, %v666
        %668 = vmatprep.mubr.f32.mxu0 %v565
        %669 = vmatmul.mubr.f32.gmra.mrb[0].mxu0 %v532
        %v670 = vpop.f32.mrb[0].mxu0
        %v671 = vadd.f32 %v547, %v670
        %v672 = vpop.f32.mrb[0].mxu0
        %v673 = vadd.f32 %v551, %v672
        %674 = vmatprep.mubr.f32.mxu0 %v568
        %675 = vmatmul.mubr.f32.gmra.mrb[0].mxu0 %v534
        %v676 = vpop.f32.mrb[0].mxu0
        %v677 = vadd.f32 %v547, %v676
        %v678 = vpop.f32.mrb[0].mxu0
        %v679 = vadd.f32 %v551, %v678
        %680 = vmatprep.mubr.f32.mxu0 %v571
        %681 = vmatmul.mubr.f32.gmra.mrb[0].mxu0 %v536
        %v682 = vpop.f32.mrb[0].mxu0
        %v683 = vadd.f32 %v547, %v682
        %v684 = vpop.f32.mrb[0].mxu0
        %v685 = vadd.f32 %v551, %v684
        %686 = vmatprep.mubr.f32.mxu0 %v574
        %687 = vmatmul.mubr.f32.gmra.mrb[0].mxu0 %v538
        %v688 = vpop.f32.mrb[0].mxu0
        %v689 = vadd.f32 %v547, %v688
        %v690 = vpop.f32.mrb[0].mxu0
        %v691 = vadd.f32 %v551, %v690
        %692 = vmatprep.mubr.f32.mxu0 %v577
        %693 = vmatmul.mubr.f32.gmra.mrb[0].mxu0 %v540
        %v694 = vpop.f32.mrb[0].mxu0
        %v695 = vadd.f32 %v547, %v694
        %v696 = vpop.f32.mrb[0].mxu0
        %v697 = vadd.f32 %v551, %v696
        %698 = vdwg.mxu0
        %v699 = vmax.f32 %v653, 0.0
        %v700 = vmax.f32 %v655, 0.0
        %v701 = vmax.f32 %v659, 0.0
        %v702 = vmax.f32 %v661, 0.0
        %v703 = vmax.f32 %v665, 0.0
        %v704 = vmax.f32 %v667, 0.0
        %v705 = vmax.f32 %v671, 0.0
        %v706 = vmax.f32 %v673, 0.0
        %v707 = vmax.f32 %v677, 0.0
        %v708 = vmax.f32 %v679, 0.0
        %v709 = vmax.f32 %v683, 0.0
        %v710 = vmax.f32 %v685, 0.0
        %v711 = vmax.f32 %v689, 0.0
        %v712 = vmax.f32 %v691, 0.0
        %v713 = vmax.f32 %v695, 0.0
        %v714 = vmax.f32 %v697, 0.0
        %v715 = vld [vmem:[#allocation2] sm:$0xff]
        %v716 = vld [vmem:[#allocation2 + $0x8] sm:$0xff]
        %v717 = vld [vmem:[#allocation2 + $0x10] sm:$0xff]
        %v718 = vld [vmem:[#allocation2 + $0x18] sm:$0xff]
        %v719 = vld [vmem:[#allocation2 + $0x20] sm:$0xff]
        %v720 = vld [vmem:[#allocation2 + $0x28] sm:$0xff]
        %v721 = vld [vmem:[#allocation2 + $0x30] sm:$0xff]
        %v722 = vld [vmem:[#allocation2 + $0x38] sm:$0xff]
        %v723 = vld [vmem:[#allocation2 + $0x40] sm:$0xff]
        %v724 = vld [vmem:[#allocation2 + $0x48] sm:$0xff]
        %v725 = vld [vmem:[#allocation2 + $0x50] sm:$0xff]
        %v726 = vld [vmem:[#allocation2 + $0x58] sm:$0xff]
        %v727 = vld [vmem:[#allocation2 + $0x60] sm:$0xff]
        %v728 = vld [vmem:[#allocation2 + $0x68] sm:$0xff]
        %v729 = vld [vmem:[#allocation2 + $0x70] sm:$0xff]
        %v730 = vld [vmem:[#allocation2 + $0x78] sm:$0xff]
        %v731 = vld [vmem:[#allocation2 + $0x80] sm:$0xff]
        %v732 = vld [vmem:[#allocation2 + $0x88] sm:$0xff]
        %v733 = vld [vmem:[#allocation2 + $0x90] sm:$0xff]
        %v734 = vld [vmem:[#allocation2 + $0x98] sm:$0xff]
        %v735 = vld [vmem:[#allocation2 + $0xa0] sm:$0xff]
        %v736 = vld [vmem:[#allocation2 + $0xa8] sm:$0xff]
        %v737 = vld [vmem:[#allocation2 + $0xb0] sm:$0xff]
        %v738 = vld [vmem:[#allocation2 + $0xb8] sm:$0xff]
        %v739 = vld [vmem:[#allocation2 + $0xc0] sm:$0xff]
        %v740 = vld [vmem:[#allocation2 + $0xc8] sm:$0xff]
        %v741 = vld [vmem:[#allocation2 + $0xd0] sm:$0xff]
        %v742 = vld [vmem:[#allocation2 + $0xd8] sm:$0xff]
        %v743 = vld [vmem:[#allocation2 + $0xe0] sm:$0xff]
        %v744 = vld [vmem:[#allocation2 + $0xe8] sm:$0xff]
        %v745 = vld [vmem:[#allocation2 + $0xf0] sm:$0xff]
        %v746 = vld [vmem:[#allocation2 + $0xf8] sm:$0xff]
        %v747 = vld [vmem:[%s6] sm:$0x1]
        %v749 = vlaneseq
        %v750 = vshrl.u32 %v749, 7
        %v751 = vsub.s32 0, %v750
        %v752 = vrot.slane %v747, %v751
        %754 = vmatprep.subr.mxu0 0.0
        %755 = vmatpush1.msra.mxu0 %v715
        %756 = vmatprep.subr.mxu0 0.0
        %757 = vmatpush1.msra.mxu0 %v716
        %758 = vmatprep.subr.mxu0 0.0
        %759 = vmatpush1.msra.mxu0 %v717
        %760 = vmatprep.subr.mxu0 0.0
        %761 = vmatpush1.msra.mxu0 %v718
        %762 = vmatprep.subr.mxu0 0.0
        %763 = vmatpush1.msra.mxu0 %v719
        %764 = vmatprep.subr.mxu0 0.0
        %765 = vmatpush1.msra.mxu0 %v720
        %766 = vmatprep.subr.mxu0 0.0
        %767 = vmatpush1.msra.mxu0 %v721
        %768 = vmatprep.subr.mxu0 0.0
        %769 = vmatpush1.msra.mxu0 %v722
        %770 = vmatprep.subr.mxu0 0.0
        %771 = vmatpush1.msra.mxu0 %v723
        %772 = vmatprep.subr.mxu0 0.0
        %773 = vmatpush1.msra.mxu0 %v724
        %774 = vmatprep.subr.mxu0 0.0
        %775 = vmatpush1.msra.mxu0 %v725
        %776 = vmatprep.subr.mxu0 0.0
        %777 = vmatpush1.msra.mxu0 %v726
        %778 = vmatprep.subr.mxu0 0.0
        %779 = vmatpush1.msra.mxu0 %v727
        %780 = vmatprep.subr.mxu0 0.0
        %781 = vmatpush1.msra.mxu0 %v728
        %782 = vmatprep.subr.mxu0 0.0
        %783 = vmatpush1.msra.mxu0 %v729
        %784 = vmatprep.subr.mxu0 0.0
        %785 = vmatpush1.msra.mxu0 %v730
        %786 = vmatprep.subr.mxu0 0.0
        %787 = vmatpush1.msra.mxu0 %v731
        %788 = vmatprep.subr.mxu0 0.0
        %789 = vmatpush1.msra.mxu0 %v732
        %790 = vmatprep.subr.mxu0 0.0
        %791 = vmatpush1.msra.mxu0 %v733
        %792 = vmatprep.subr.mxu0 0.0
        %793 = vmatpush1.msra.mxu0 %v734
        %794 = vmatprep.subr.mxu0 0.0
        %795 = vmatpush1.msra.mxu0 %v735
        %796 = vmatprep.subr.mxu0 0.0
        %797 = vmatpush1.msra.mxu0 %v736
        %798 = vmatprep.subr.mxu0 0.0
        %799 = vmatpush1.msra.mxu0 %v737
        %800 = vmatprep.subr.mxu0 0.0
        %801 = vmatpush1.msra.mxu0 %v738
        %802 = vmatprep.subr.mxu0 0.0
        %803 = vmatpush1.msra.mxu0 %v739
        %804 = vmatprep.subr.mxu0 0.0
        %805 = vmatpush1.msra.mxu0 %v740
        %806 = vmatprep.subr.mxu0 0.0
        %807 = vmatpush1.msra.mxu0 %v741
        %808 = vmatprep.subr.mxu0 0.0
        %809 = vmatpush1.msra.mxu0 %v742
        %810 = vmatprep.subr.mxu0 0.0
        %811 = vmatpush1.msra.mxu0 %v743
        %812 = vmatprep.subr.mxu0 0.0
        %813 = vmatpush1.msra.mxu0 %v744
        %814 = vmatprep.subr.mxu0 0.0
        %815 = vmatpush1.msra.mxu0 %v745
        %816 = vmatprep.subr.mxu0 0.0
        %817 = vmatpush1.msra.mxu0 %v746
        %818 = vmatprep.mubr.f32.mxu0 %v700
        %819 = vmatmul.mubr.f32.gmra.mrb[0].mxu0 %v699
        %v820 = vpop.f32.mrb[0].mxu0
        %v821 = vadd.f32 %v752, %v820
        %v822 = vpop.f32.mrb[0].mxu0
        %823 = vmatprep.mubr.f32.mxu0 %v702
        %824 = vmatmul.mubr.f32.gmra.mrb[0].mxu0 %v701
        %v825 = vpop.f32.mrb[0].mxu0
        %v826 = vadd.f32 %v752, %v825
        %v827 = vpop.f32.mrb[0].mxu0
        %828 = vmatprep.mubr.f32.mxu0 %v704
        %829 = vmatmul.mubr.f32.gmra.mrb[0].mxu0 %v703
        %v830 = vpop.f32.mrb[0].mxu0
        %v831 = vadd.f32 %v752, %v830
        %v832 = vpop.f32.mrb[0].mxu0
        %833 = vmatprep.mubr.f32.mxu0 %v706
        %834 = vmatmul.mubr.f32.gmra.mrb[0].mxu0 %v705
        %v835 = vpop.f32.mrb[0].mxu0
        %v836 = vadd.f32 %v752, %v835
        %v837 = vpop.f32.mrb[0].mxu0
        %838 = vmatprep.mubr.f32.mxu0 %v708
        %839 = vmatmul.mubr.f32.gmra.mrb[0].mxu0 %v707
        %v840 = vpop.f32.mrb[0].mxu0
        %v841 = vadd.f32 %v752, %v840
        %v842 = vpop.f32.mrb[0].mxu0
        %843 = vmatprep.mubr.f32.mxu0 %v710
        %844 = vmatmul.mubr.f32.gmra.mrb[0].mxu0 %v709
        %v845 = vpop.f32.mrb[0].mxu0
        %v846 = vadd.f32 %v752, %v845
        %v847 = vpop.f32.mrb[0].mxu0
        %848 = vmatprep.mubr.f32.mxu0 %v712
        %849 = vmatmul.mubr.f32.gmra.mrb[0].mxu0 %v711
        %v850 = vpop.f32.mrb[0].mxu0
        %v851 = vadd.f32 %v752, %v850
        %v852 = vpop.f32.mrb[0].mxu0
        %853 = vmatprep.mubr.f32.mxu0 %v714
        %854 = vmatmul.mubr.f32.gmra.mrb[0].mxu0 %v713
        %v855 = vpop.f32.mrb[0].mxu0
        %v856 = vadd.f32 %v752, %v855
        %v857 = vpop.f32.mrb[0].mxu0
        %858 = vdwg.mxu0
        %v859 = vld [vmem:[%s7] sm:$0xff]
        %v860 = vld [vmem:[%s7 + $0x8] sm:$0xff]
        %v861 = vld [vmem:[%s7 + $0x10] sm:$0xff]
        %v862 = vld [vmem:[%s7 + $0x18] sm:$0xff]
        %v863 = vld [vmem:[%s479] sm:$0xff]
        %v864 = vld [vmem:[%s483] sm:$0xff]
        %vm865 = vcmask 261120
        %v867 = vsel %vm865, %v863, 0
        %869 = vmatprep.subr.mxu0 0.0
        %870 = vmatpush1.msra.mxu0 %v859
        %871 = vmatprep.subr.mxu0 0.0
        %872 = vmatpush1.msra.mxu0 %v860
        %873 = vmatprep.subr.mxu0 0.0
        %874 = vmatpush1.msra.mxu0 %v861
        %875 = vmatprep.subr.mxu0 0.0
        %876 = vmatpush1.msra.mxu0 %v862
        %877 = vmatprep.subr.mxu0 0.0
        %878 = vmatpush1.msra.mxu0 0.0
        %879 = vmatprep.subr.mxu0 0.0
        %880 = vmatpush1.msra.mxu0 0.0
        %881 = vmatprep.subr.mxu0 0.0
        %882 = vmatpush1.msra.mxu0 0.0
        %883 = vmatprep.subr.mxu0 0.0
        %884 = vmatpush1.msra.mxu0 0.0
        %885 = vmatprep.subr.mxu0 0.0
        %886 = vmatpush1.msra.mxu0 0.0
        %887 = vmatprep.subr.mxu0 0.0
        %888 = vmatpush1.msra.mxu0 0.0
        %889 = vmatprep.subr.mxu0 0.0
        %890 = vmatpush1.msra.mxu0 0.0
        %891 = vmatprep.subr.mxu0 0.0
        %892 = vmatpush1.msra.mxu0 0.0
        %893 = vmatprep.subr.mxu0 0.0
        %894 = vmatpush1.msra.mxu0 0.0
        %895 = vmatprep.subr.mxu0 0.0
        %896 = vmatpush1.msra.mxu0 0.0
        %897 = vmatprep.subr.mxu0 0.0
        %898 = vmatpush1.msra.mxu0 0.0
        %899 = vmatprep.subr.mxu0 0.0
        %900 = vmatpush1.msra.mxu0 0.0
        %901 = vmatprep.subr.mxu0 0.0
        %902 = vmatpush1.msra.mxu0 0.0
        %903 = vmatprep.subr.mxu0 0.0
        %904 = vmatpush1.msra.mxu0 0.0
        %905 = vmatprep.subr.mxu0 0.0
        %906 = vmatpush1.msra.mxu0 0.0
        %907 = vmatprep.subr.mxu0 0.0
        %908 = vmatpush1.msra.mxu0 0.0
        %909 = vmatprep.subr.mxu0 0.0
        %910 = vmatpush1.msra.mxu0 0.0
        %911 = vmatprep.subr.mxu0 0.0
        %912 = vmatpush1.msra.mxu0 0.0
        %913 = vmatprep.subr.mxu0 0.0
        %914 = vmatpush1.msra.mxu0 0.0
        %915 = vmatprep.subr.mxu0 0.0
        %916 = vmatpush1.msra.mxu0 0.0
        %917 = vmatprep.subr.mxu0 0.0
        %918 = vmatpush1.msra.mxu0 0.0
        %919 = vmatprep.subr.mxu0 0.0
        %920 = vmatpush1.msra.mxu0 0.0
        %921 = vmatprep.subr.mxu0 0.0
        %922 = vmatpush1.msra.mxu0 0.0
        %923 = vmatprep.subr.mxu0 0.0
        %924 = vmatpush1.msra.mxu0 0.0
        %925 = vmatprep.subr.mxu0 0.0
        %926 = vmatpush1.msra.mxu0 0.0
        %927 = vmatprep.subr.mxu0 0.0
        %928 = vmatpush1.msra.mxu0 0.0
        %929 = vmatprep.subr.mxu0 0.0
        %930 = vmatpush1.msra.mxu0 0.0
        %931 = vmatprep.subr.mxu0 0.0
        %932 = vmatpush1.msra.mxu0 0.0
        %933 = vmatprep.mubr.f32.mxu0 0.0
        %934 = vmatmul.mubr.f32.gmra.mrb[0].mxu0 %v867
        %v935 = vpop.f32.mrb[0].mxu0
        %v936 = vadd.f32 0.0, %v935
        %v937 = vpop.f32.mrb[0].mxu0
        %938 = vdwg.mxu0
        %v939 = vadd.f32 %v821, %v936
        %v940 = vxor.u32 %v939, 2147483648
        %v941 = vmul.f32 %v940, 1.442695
        %v942 = vpow.pop %v941
        %v943 = vadd.f32 %v942, 1.0
        %v944 = vrcp.pop %v943
        %v945 = vmul.f32 1.0, %v944
        %v946 = vtanh.pop %v939
        %948 = vrot.lane.b32.xlu0 %v864, 32
        %v949 = vpop.permute.xlu0 %948
        %v951 = vmul.f32 %v945, %v949
        %953 = vrot.lane.b32.xlu0 %v946, 64
        %v954 = vpop.permute.xlu0 %953
        %v956 = vmul.f32 %v945, %v954
        %958 = vrot.lane.b32.xlu0 %v956, 32
        %v959 = vpop.permute.xlu0 %958
        %v961 = vadd.f32 %v951, %v959
        %v962 = vtanh.pop %v961
        %964 = vrot.lane.b32.xlu0 %v962, 64
        %v965 = vpop.permute.xlu0 %964
        %v967 = vmul.f32 %v945, %v965
        %969 = vrot.lane.b32.xlu0 %v967, 32
        %v970 = vpop.permute.xlu0 %969
        %v971 = vsel %vm865, %v970, 0
        %973 = vmatprep.subr.mxu0 0.0
        %974 = vmatpush1.msra.mxu0 %v859
        %975 = vmatprep.subr.mxu0 0.0
        %976 = vmatpush1.msra.mxu0 %v860
        %977 = vmatprep.subr.mxu0 0.0
        %978 = vmatpush1.msra.mxu0 %v861
        %979 = vmatprep.subr.mxu0 0.0
        %980 = vmatpush1.msra.mxu0 %v862
        %981 = vmatprep.subr.mxu0 0.0
        %982 = vmatpush1.msra.mxu0 0.0
        %983 = vmatprep.subr.mxu0 0.0
        %984 = vmatpush1.msra.mxu0 0.0
        %985 = vmatprep.subr.mxu0 0.0
        %986 = vmatpush1.msra.mxu0 0.0
        %987 = vmatprep.subr.mxu0 0.0
        %988 = vmatpush1.msra.mxu0 0.0
        %989 = vmatprep.subr.mxu0 0.0
        %990 = vmatpush1.msra.mxu0 0.0
        %991 = vmatprep.subr.mxu0 0.0
        %992 = vmatpush1.msra.mxu0 0.0
        %993 = vmatprep.subr.mxu0 0.0
        %994 = vmatpush1.msra.mxu0 0.0
        %995 = vmatprep.subr.mxu0 0.0
        %996 = vmatpush1.msra.mxu0 0.0
        %997 = vmatprep.subr.mxu0 0.0
        %998 = vmatpush1.msra.mxu0 0.0
        %999 = vmatprep.subr.mxu0 0.0
        %1000 = vmatpush1.msra.mxu0 0.0
        %1001 = vmatprep.subr.mxu0 0.0
        %1002 = vmatpush1.msra.mxu0 0.0
        %1003 = vmatprep.subr.mxu0 0.0
        %1004 = vmatpush1.msra.mxu0 0.0
        %1005 = vmatprep.subr.mxu0 0.0
        %1006 = vmatpush1.msra.mxu0 0.0
        %1007 = vmatprep.subr.mxu0 0.0
        %1008 = vmatpush1.msra.mxu0 0.0
        %1009 = vmatprep.subr.mxu0 0.0
        %1010 = vmatpush1.msra.mxu0 0.0
        %1011 = vmatprep.subr.mxu0 0.0
        %1012 = vmatpush1.msra.mxu0 0.0
        %1013 = vmatprep.subr.mxu0 0.0
        %1014 = vmatpush1.msra.mxu0 0.0
        %1015 = vmatprep.subr.mxu0 0.0
        %1016 = vmatpush1.msra.mxu0 0.0
        %1017 = vmatprep.subr.mxu0 0.0
        %1018 = vmatpush1.msra.mxu0 0.0
        %1019 = vmatprep.subr.mxu0 0.0
        %1020 = vmatpush1.msra.mxu0 0.0
        %1021 = vmatprep.subr.mxu0 0.0
        %1022 = vmatpush1.msra.mxu0 0.0
        %1023 = vmatprep.subr.mxu0 0.0
        %1024 = vmatpush1.msra.mxu0 0.0
        %1025 = vmatprep.subr.mxu0 0.0
        %1026 = vmatpush1.msra.mxu0 0.0
        %1027 = vmatprep.subr.mxu0 0.0
        %1028 = vmatpush1.msra.mxu0 0.0
        %1029 = vmatprep.subr.mxu0 0.0
        %1030 = vmatpush1.msra.mxu0 0.0
        %1031 = vmatprep.subr.mxu0 0.0
        %1032 = vmatpush1.msra.mxu0 0.0
        %1033 = vmatprep.subr.mxu0 0.0
        %1034 = vmatpush1.msra.mxu0 0.0
        %1035 = vmatprep.subr.mxu0 0.0
        %1036 = vmatpush1.msra.mxu0 0.0
        %1037 = vmatprep.mubr.f32.mxu0 0.0
        %1038 = vmatmul.mubr.f32.gmra.mrb[0].mxu0 %v971
        %v1039 = vpop.f32.mrb[0].mxu0
        %v1040 = vadd.f32 0.0, %v1039
        %v1041 = vpop.f32.mrb[0].mxu0
        %1042 = vdwg.mxu0
        %v1043 = vadd.f32 %v826, %v1040
        %v1044 = vxor.u32 %v1043, 2147483648
        %v1045 = vmul.f32 %v1044, 1.442695
        %v1046 = vpow.pop %v1045
        %v1047 = vadd.f32 %v1046, 1.0
        %v1048 = vrcp.pop %v1047
        %v1049 = vmul.f32 1.0, %v1048
        %v1050 = vtanh.pop %v1043
        %v1051 = vmul.f32 %v1049, %v961
        %1053 = vrot.lane.b32.xlu0 %v1050, 64
        %v1054 = vpop.permute.xlu0 %1053
        %v1056 = vmul.f32 %v1049, %v1054
        %1058 = vrot.lane.b32.xlu0 %v1056, 32
        %v1059 = vpop.permute.xlu0 %1058
        %v1061 = vadd.f32 %v1051, %v1059
        %v1062 = vtanh.pop %v1061
        %1064 = vrot.lane.b32.xlu0 %v1062, 64
        %v1065 = vpop.permute.xlu0 %1064
        %v1067 = vmul.f32 %v1049, %v1065
        %1069 = vrot.lane.b32.xlu0 %v1067, 32
        %v1070 = vpop.permute.xlu0 %1069
        %v1071 = vsel %vm865, %v1070, 0
        %1073 = vmatprep.subr.mxu0 0.0
        %1074 = vmatpush1.msra.mxu0 %v859
        %1075 = vmatprep.subr.mxu0 0.0
        %1076 = vmatpush1.msra.mxu0 %v860
        %1077 = vmatprep.subr.mxu0 0.0
        %1078 = vmatpush1.msra.mxu0 %v861
        %1079 = vmatprep.subr.mxu0 0.0
        %1080 = vmatpush1.msra.mxu0 %v862
        %1081 = vmatprep.subr.mxu0 0.0
        %1082 = vmatpush1.msra.mxu0 0.0
        %1083 = vmatprep.subr.mxu0 0.0
        %1084 = vmatpush1.msra.mxu0 0.0
        %1085 = vmatprep.subr.mxu0 0.0
        %1086 = vmatpush1.msra.mxu0 0.0
        %1087 = vmatprep.subr.mxu0 0.0
        %1088 = vmatpush1.msra.mxu0 0.0
        %1089 = vmatprep.subr.mxu0 0.0
        %1090 = vmatpush1.msra.mxu0 0.0
        %1091 = vmatprep.subr.mxu0 0.0
        %1092 = vmatpush1.msra.mxu0 0.0
        %1093 = vmatprep.subr.mxu0 0.0
        %1094 = vmatpush1.msra.mxu0 0.0
        %1095 = vmatprep.subr.mxu0 0.0
        %1096 = vmatpush1.msra.mxu0 0.0
        %1097 = vmatprep.subr.mxu0 0.0
        %1098 = vmatpush1.msra.mxu0 0.0
        %1099 = vmatprep.subr.mxu0 0.0
        %1100 = vmatpush1.msra.mxu0 0.0
        %1101 = vmatprep.subr.mxu0 0.0
        %1102 = vmatpush1.msra.mxu0 0.0
        %1103 = vmatprep.subr.mxu0 0.0
        %1104 = vmatpush1.msra.mxu0 0.0
        %1105 = vmatprep.subr.mxu0 0.0
        %1106 = vmatpush1.msra.mxu0 0.0
        %1107 = vmatprep.subr.mxu0 0.0
        %1108 = vmatpush1.msra.mxu0 0.0
        %1109 = vmatprep.subr.mxu0 0.0
        %1110 = vmatpush1.msra.mxu0 0.0
        %1111 = vmatprep.subr.mxu0 0.0
        %1112 = vmatpush1.msra.mxu0 0.0
        %1113 = vmatprep.subr.mxu0 0.0
        %1114 = vmatpush1.msra.mxu0 0.0
        %1115 = vmatprep.subr.mxu0 0.0
        %1116 = vmatpush1.msra.mxu0 0.0
        %1117 = vmatprep.subr.mxu0 0.0
        %1118 = vmatpush1.msra.mxu0 0.0
        %1119 = vmatprep.subr.mxu0 0.0
        %1120 = vmatpush1.msra.mxu0 0.0
        %1121 = vmatprep.subr.mxu0 0.0
        %1122 = vmatpush1.msra.mxu0 0.0
        %1123 = vmatprep.subr.mxu0 0.0
        %1124 = vmatpush1.msra.mxu0 0.0
        %1125 = vmatprep.subr.mxu0 0.0
        %1126 = vmatpush1.msra.mxu0 0.0
        %1127 = vmatprep.subr.mxu0 0.0
        %1128 = vmatpush1.msra.mxu0 0.0
        %1129 = vmatprep.subr.mxu0 0.0
        %1130 = vmatpush1.msra.mxu0 0.0
        %1131 = vmatprep.subr.mxu0 0.0
        %1132 = vmatpush1.msra.mxu0 0.0
        %1133 = vmatprep.subr.mxu0 0.0
        %1134 = vmatpush1.msra.mxu0 0.0
        %1135 = vmatprep.subr.mxu0 0.0
        %1136 = vmatpush1.msra.mxu0 0.0
        %1137 = vmatprep.mubr.f32.mxu0 0.0
        %1138 = vmatmul.mubr.f32.gmra.mrb[0].mxu0 %v1071
        %v1139 = vpop.f32.mrb[0].mxu0
        %v1140 = vadd.f32 0.0, %v1139
        %v1141 = vpop.f32.mrb[0].mxu0
        %1142 = vdwg.mxu0
        %v1143 = vadd.f32 %v831, %v1140
        %v1144 = vxor.u32 %v1143, 2147483648
        %v1145 = vmul.f32 %v1144, 1.442695
        %v1146 = vpow.pop %v1145
        %v1147 = vadd.f32 %v1146, 1.0
        %v1148 = vrcp.pop %v1147
        %v1149 = vmul.f32 1.0, %v1148
        %v1150 = vtanh.pop %v1143
        %v1151 = vmul.f32 %v1149, %v1061
        %1153 = vrot.lane.b32.xlu0 %v1150, 64
        %v1154 = vpop.permute.xlu0 %1153
        %v1156 = vmul.f32 %v1149, %v1154
        %1158 = vrot.lane.b32.xlu0 %v1156, 32
        %v1159 = vpop.permute.xlu0 %1158
        %v1161 = vadd.f32 %v1151, %v1159
        %v1162 = vtanh.pop %v1161
        %1164 = vrot.lane.b32.xlu0 %v1162, 64
        %v1165 = vpop.permute.xlu0 %1164
        %v1167 = vmul.f32 %v1149, %v1165
        %1169 = vrot.lane.b32.xlu0 %v1167, 32
        %v1170 = vpop.permute.xlu0 %1169
        %v1171 = vsel %vm865, %v1170, 0
        %1173 = vmatprep.subr.mxu0 0.0
        %1174 = vmatpush1.msra.mxu0 %v859
        %1175 = vmatprep.subr.mxu0 0.0
        %1176 = vmatpush1.msra.mxu0 %v860
        %1177 = vmatprep.subr.mxu0 0.0
        %1178 = vmatpush1.msra.mxu0 %v861
        %1179 = vmatprep.subr.mxu0 0.0
        %1180 = vmatpush1.msra.mxu0 %v862
        %1181 = vmatprep.subr.mxu0 0.0
        %1182 = vmatpush1.msra.mxu0 0.0
        %1183 = vmatprep.subr.mxu0 0.0
        %1184 = vmatpush1.msra.mxu0 0.0
        %1185 = vmatprep.subr.mxu0 0.0
        %1186 = vmatpush1.msra.mxu0 0.0
        %1187 = vmatprep.subr.mxu0 0.0
        %1188 = vmatpush1.msra.mxu0 0.0
        %1189 = vmatprep.subr.mxu0 0.0
        %1190 = vmatpush1.msra.mxu0 0.0
        %1191 = vmatprep.subr.mxu0 0.0
        %1192 = vmatpush1.msra.mxu0 0.0
        %1193 = vmatprep.subr.mxu0 0.0
        %1194 = vmatpush1.msra.mxu0 0.0
        %1195 = vmatprep.subr.mxu0 0.0
        %1196 = vmatpush1.msra.mxu0 0.0
        %1197 = vmatprep.subr.mxu0 0.0
        %1198 = vmatpush1.msra.mxu0 0.0
        %1199 = vmatprep.subr.mxu0 0.0
        %1200 = vmatpush1.msra.mxu0 0.0
        %1201 = vmatprep.subr.mxu0 0.0
        %1202 = vmatpush1.msra.mxu0 0.0
        %1203 = vmatprep.subr.mxu0 0.0
        %1204 = vmatpush1.msra.mxu0 0.0
        %1205 = vmatprep.subr.mxu0 0.0
        %1206 = vmatpush1.msra.mxu0 0.0
        %1207 = vmatprep.subr.mxu0 0.0
        %1208 = vmatpush1.msra.mxu0 0.0
        %1209 = vmatprep.subr.mxu0 0.0
        %1210 = vmatpush1.msra.mxu0 0.0
        %1211 = vmatprep.subr.mxu0 0.0
        %1212 = vmatpush1.msra.mxu0 0.0
        %1213 = vmatprep.subr.mxu0 0.0
        %1214 = vmatpush1.msra.mxu0 0.0
        %1215 = vmatprep.subr.mxu0 0.0
        %1216 = vmatpush1.msra.mxu0 0.0
        %1217 = vmatprep.subr.mxu0 0.0
        %1218 = vmatpush1.msra.mxu0 0.0
        %1219 = vmatprep.subr.mxu0 0.0
        %1220 = vmatpush1.msra.mxu0 0.0
        %1221 = vmatprep.subr.mxu0 0.0
        %1222 = vmatpush1.msra.mxu0 0.0
        %1223 = vmatprep.subr.mxu0 0.0
        %1224 = vmatpush1.msra.mxu0 0.0
        %1225 = vmatprep.subr.mxu0 0.0
        %1226 = vmatpush1.msra.mxu0 0.0
        %1227 = vmatprep.subr.mxu0 0.0
        %1228 = vmatpush1.msra.mxu0 0.0
        %1229 = vmatprep.subr.mxu0 0.0
        %1230 = vmatpush1.msra.mxu0 0.0
        %1231 = vmatprep.subr.mxu0 0.0
        %1232 = vmatpush1.msra.mxu0 0.0
        %1233 = vmatprep.subr.mxu0 0.0
        %1234 = vmatpush1.msra.mxu0 0.0
        %1235 = vmatprep.subr.mxu0 0.0
        %1236 = vmatpush1.msra.mxu0 0.0
        %1237 = vmatprep.mubr.f32.mxu0 0.0
        %1238 = vmatmul.mubr.f32.gmra.mrb[0].mxu0 %v1171
        %v1239 = vpop.f32.mrb[0].mxu0
        %v1240 = vadd.f32 0.0, %v1239
        %v1241 = vpop.f32.mrb[0].mxu0
        %1242 = vdwg.mxu0
        %v1243 = vadd.f32 %v836, %v1240
        %v1244 = vxor.u32 %v1243, 2147483648
        %v1245 = vmul.f32 %v1244, 1.442695
        %v1246 = vpow.pop %v1245
        %v1247 = vadd.f32 %v1246, 1.0
        %v1248 = vrcp.pop %v1247
        %v1249 = vmul.f32 1.0, %v1248
        %v1250 = vtanh.pop %v1243
        %v1251 = vmul.f32 %v1249, %v1161
        %1253 = vrot.lane.b32.xlu0 %v1250, 64
        %v1254 = vpop.permute.xlu0 %1253
        %v1256 = vmul.f32 %v1249, %v1254
        %1258 = vrot.lane.b32.xlu0 %v1256, 32
        %v1259 = vpop.permute.xlu0 %1258
        %v1261 = vadd.f32 %v1251, %v1259
        %v1262 = vtanh.pop %v1261
        %1264 = vrot.lane.b32.xlu0 %v1262, 64
        %v1265 = vpop.permute.xlu0 %1264
        %v1267 = vmul.f32 %v1249, %v1265
        %1269 = vrot.lane.b32.xlu0 %v1267, 32
        %v1270 = vpop.permute.xlu0 %1269
        %v1271 = vsel %vm865, %v1270, 0
        %1273 = vmatprep.subr.mxu0 0.0
        %1274 = vmatpush1.msra.mxu0 %v859
        %1275 = vmatprep.subr.mxu0 0.0
        %1276 = vmatpush1.msra.mxu0 %v860
        %1277 = vmatprep.subr.mxu0 0.0
        %1278 = vmatpush1.msra.mxu0 %v861
        %1279 = vmatprep.subr.mxu0 0.0
        %1280 = vmatpush1.msra.mxu0 %v862
        %1281 = vmatprep.subr.mxu0 0.0
        %1282 = vmatpush1.msra.mxu0 0.0
        %1283 = vmatprep.subr.mxu0 0.0
        %1284 = vmatpush1.msra.mxu0 0.0
        %1285 = vmatprep.subr.mxu0 0.0
        %1286 = vmatpush1.msra.mxu0 0.0
        %1287 = vmatprep.subr.mxu0 0.0
        %1288 = vmatpush1.msra.mxu0 0.0
        %1289 = vmatprep.subr.mxu0 0.0
        %1290 = vmatpush1.msra.mxu0 0.0
        %1291 = vmatprep.subr.mxu0 0.0
        %1292 = vmatpush1.msra.mxu0 0.0
        %1293 = vmatprep.subr.mxu0 0.0
        %1294 = vmatpush1.msra.mxu0 0.0
        %1295 = vmatprep.subr.mxu0 0.0
        %1296 = vmatpush1.msra.mxu0 0.0
        %1297 = vmatprep.subr.mxu0 0.0
        %1298 = vmatpush1.msra.mxu0 0.0
        %1299 = vmatprep.subr.mxu0 0.0
        %1300 = vmatpush1.msra.mxu0 0.0
        %1301 = vmatprep.subr.mxu0 0.0
        %1302 = vmatpush1.msra.mxu0 0.0
        %1303 = vmatprep.subr.mxu0 0.0
        %1304 = vmatpush1.msra.mxu0 0.0
        %1305 = vmatprep.subr.mxu0 0.0
        %1306 = vmatpush1.msra.mxu0 0.0
        %1307 = vmatprep.subr.mxu0 0.0
        %1308 = vmatpush1.msra.mxu0 0.0
        %1309 = vmatprep.subr.mxu0 0.0
        %1310 = vmatpush1.msra.mxu0 0.0
        %1311 = vmatprep.subr.mxu0 0.0
        %1312 = vmatpush1.msra.mxu0 0.0
        %1313 = vmatprep.subr.mxu0 0.0
        %1314 = vmatpush1.msra.mxu0 0.0
        %1315 = vmatprep.subr.mxu0 0.0
        %1316 = vmatpush1.msra.mxu0 0.0
        %1317 = vmatprep.subr.mxu0 0.0
        %1318 = vmatpush1.msra.mxu0 0.0
        %1319 = vmatprep.subr.mxu0 0.0
        %1320 = vmatpush1.msra.mxu0 0.0
        %1321 = vmatprep.subr.mxu0 0.0
        %1322 = vmatpush1.msra.mxu0 0.0
        %1323 = vmatprep.subr.mxu0 0.0
        %1324 = vmatpush1.msra.mxu0 0.0
        %1325 = vmatprep.subr.mxu0 0.0
        %1326 = vmatpush1.msra.mxu0 0.0
        %1327 = vmatprep.subr.mxu0 0.0
        %1328 = vmatpush1.msra.mxu0 0.0
        %1329 = vmatprep.subr.mxu0 0.0
        %1330 = vmatpush1.msra.mxu0 0.0
        %1331 = vmatprep.subr.mxu0 0.0
        %1332 = vmatpush1.msra.mxu0 0.0
        %1333 = vmatprep.subr.mxu0 0.0
        %1334 = vmatpush1.msra.mxu0 0.0
        %1335 = vmatprep.subr.mxu0 0.0
        %1336 = vmatpush1.msra.mxu0 0.0
        %1337 = vmatprep.mubr.f32.mxu0 0.0
        %1338 = vmatmul.mubr.f32.gmra.mrb[0].mxu0 %v1271
        %v1339 = vpop.f32.mrb[0].mxu0
        %v1340 = vadd.f32 0.0, %v1339
        %v1341 = vpop.f32.mrb[0].mxu0
        %1342 = vdwg.mxu0
        %v1343 = vadd.f32 %v841, %v1340
        %v1344 = vxor.u32 %v1343, 2147483648
        %v1345 = vmul.f32 %v1344, 1.442695
        %v1346 = vpow.pop %v1345
        %v1347 = vadd.f32 %v1346, 1.0
        %v1348 = vrcp.pop %v1347
        %v1349 = vmul.f32 1.0, %v1348
        %v1350 = vtanh.pop %v1343
        %v1351 = vmul.f32 %v1349, %v1261
        %1353 = vrot.lane.b32.xlu0 %v1350, 64
        %v1354 = vpop.permute.xlu0 %1353
        %v1356 = vmul.f32 %v1349, %v1354
        %1358 = vrot.lane.b32.xlu0 %v1356, 32
        %v1359 = vpop.permute.xlu0 %1358
        %v1361 = vadd.f32 %v1351, %v1359
        %v1362 = vtanh.pop %v1361
        %1364 = vrot.lane.b32.xlu0 %v1362, 64
        %v1365 = vpop.permute.xlu0 %1364
        %v1367 = vmul.f32 %v1349, %v1365
        %1369 = vrot.lane.b32.xlu0 %v1367, 32
        %v1370 = vpop.permute.xlu0 %1369
        %v1371 = vsel %vm865, %v1370, 0
        %1373 = vmatprep.subr.mxu0 0.0
        %1374 = vmatpush1.msra.mxu0 %v859
        %1375 = vmatprep.subr.mxu0 0.0
        %1376 = vmatpush1.msra.mxu0 %v860
        %1377 = vmatprep.subr.mxu0 0.0
        %1378 = vmatpush1.msra.mxu0 %v861
        %1379 = vmatprep.subr.mxu0 0.0
        %1380 = vmatpush1.msra.mxu0 %v862
        %1381 = vmatprep.subr.mxu0 0.0
        %1382 = vmatpush1.msra.mxu0 0.0
        %1383 = vmatprep.subr.mxu0 0.0
        %1384 = vmatpush1.msra.mxu0 0.0
        %1385 = vmatprep.subr.mxu0 0.0
        %1386 = vmatpush1.msra.mxu0 0.0
        %1387 = vmatprep.subr.mxu0 0.0
        %1388 = vmatpush1.msra.mxu0 0.0
        %1389 = vmatprep.subr.mxu0 0.0
        %1390 = vmatpush1.msra.mxu0 0.0
        %1391 = vmatprep.subr.mxu0 0.0
        %1392 = vmatpush1.msra.mxu0 0.0
        %1393 = vmatprep.subr.mxu0 0.0
        %1394 = vmatpush1.msra.mxu0 0.0
        %1395 = vmatprep.subr.mxu0 0.0
        %1396 = vmatpush1.msra.mxu0 0.0
        %1397 = vmatprep.subr.mxu0 0.0
        %1398 = vmatpush1.msra.mxu0 0.0
        %1399 = vmatprep.subr.mxu0 0.0
        %1400 = vmatpush1.msra.mxu0 0.0
        %1401 = vmatprep.subr.mxu0 0.0
        %1402 = vmatpush1.msra.mxu0 0.0
        %1403 = vmatprep.subr.mxu0 0.0
        %1404 = vmatpush1.msra.mxu0 0.0
        %1405 = vmatprep.subr.mxu0 0.0
        %1406 = vmatpush1.msra.mxu0 0.0
        %1407 = vmatprep.subr.mxu0 0.0
        %1408 = vmatpush1.msra.mxu0 0.0
        %1409 = vmatprep.subr.mxu0 0.0
        %1410 = vmatpush1.msra.mxu0 0.0
        %1411 = vmatprep.subr.mxu0 0.0
        %1412 = vmatpush1.msra.mxu0 0.0
        %1413 = vmatprep.subr.mxu0 0.0
        %1414 = vmatpush1.msra.mxu0 0.0
        %1415 = vmatprep.subr.mxu0 0.0
        %1416 = vmatpush1.msra.mxu0 0.0
        %1417 = vmatprep.subr.mxu0 0.0
        %1418 = vmatpush1.msra.mxu0 0.0
        %1419 = vmatprep.subr.mxu0 0.0
        %1420 = vmatpush1.msra.mxu0 0.0
        %1421 = vmatprep.subr.mxu0 0.0
        %1422 = vmatpush1.msra.mxu0 0.0
        %1423 = vmatprep.subr.mxu0 0.0
        %1424 = vmatpush1.msra.mxu0 0.0
        %1425 = vmatprep.subr.mxu0 0.0
        %1426 = vmatpush1.msra.mxu0 0.0
        %1427 = vmatprep.subr.mxu0 0.0
        %1428 = vmatpush1.msra.mxu0 0.0
        %1429 = vmatprep.subr.mxu0 0.0
        %1430 = vmatpush1.msra.mxu0 0.0
        %1431 = vmatprep.subr.mxu0 0.0
        %1432 = vmatpush1.msra.mxu0 0.0
        %1433 = vmatprep.subr.mxu0 0.0
        %1434 = vmatpush1.msra.mxu0 0.0
        %1435 = vmatprep.subr.mxu0 0.0
        %1436 = vmatpush1.msra.mxu0 0.0
        %1437 = vmatprep.mubr.f32.mxu0 0.0
        %1438 = vmatmul.mubr.f32.gmra.mrb[0].mxu0 %v1371
        %v1439 = vpop.f32.mrb[0].mxu0
        %v1440 = vadd.f32 0.0, %v1439
        %v1441 = vpop.f32.mrb[0].mxu0
        %1442 = vdwg.mxu0
        %v1443 = vadd.f32 %v846, %v1440
        %v1444 = vxor.u32 %v1443, 2147483648
        %v1445 = vmul.f32 %v1444, 1.442695
        %v1446 = vpow.pop %v1445
        %v1447 = vadd.f32 %v1446, 1.0
        %v1448 = vrcp.pop %v1447
        %v1449 = vmul.f32 1.0, %v1448
        %v1450 = vtanh.pop %v1443
        %v1451 = vmul.f32 %v1449, %v1361
        %1453 = vrot.lane.b32.xlu0 %v1450, 64
        %v1454 = vpop.permute.xlu0 %1453
        %v1456 = vmul.f32 %v1449, %v1454
        %1458 = vrot.lane.b32.xlu0 %v1456, 32
        %v1459 = vpop.permute.xlu0 %1458
        %v1461 = vadd.f32 %v1451, %v1459
        %v1462 = vtanh.pop %v1461
        %1464 = vrot.lane.b32.xlu0 %v1462, 64
        %v1465 = vpop.permute.xlu0 %1464
        %v1467 = vmul.f32 %v1449, %v1465
        %1469 = vrot.lane.b32.xlu0 %v1467, 32
        %v1470 = vpop.permute.xlu0 %1469
        %v1471 = vsel %vm865, %v1470, 0
        %1473 = vmatprep.subr.mxu0 0.0
        %1474 = vmatpush1.msra.mxu0 %v859
        %1475 = vmatprep.subr.mxu0 0.0
        %1476 = vmatpush1.msra.mxu0 %v860
        %1477 = vmatprep.subr.mxu0 0.0
        %1478 = vmatpush1.msra.mxu0 %v861
        %1479 = vmatprep.subr.mxu0 0.0
        %1480 = vmatpush1.msra.mxu0 %v862
        %1481 = vmatprep.subr.mxu0 0.0
        %1482 = vmatpush1.msra.mxu0 0.0
        %1483 = vmatprep.subr.mxu0 0.0
        %1484 = vmatpush1.msra.mxu0 0.0
        %1485 = vmatprep.subr.mxu0 0.0
        %1486 = vmatpush1.msra.mxu0 0.0
        %1487 = vmatprep.subr.mxu0 0.0
        %1488 = vmatpush1.msra.mxu0 0.0
        %1489 = vmatprep.subr.mxu0 0.0
        %1490 = vmatpush1.msra.mxu0 0.0
        %1491 = vmatprep.subr.mxu0 0.0
        %1492 = vmatpush1.msra.mxu0 0.0
        %1493 = vmatprep.subr.mxu0 0.0
        %1494 = vmatpush1.msra.mxu0 0.0
        %1495 = vmatprep.subr.mxu0 0.0
        %1496 = vmatpush1.msra.mxu0 0.0
        %1497 = vmatprep.subr.mxu0 0.0
        %1498 = vmatpush1.msra.mxu0 0.0
        %1499 = vmatprep.subr.mxu0 0.0
        %1500 = vmatpush1.msra.mxu0 0.0
        %1501 = vmatprep.subr.mxu0 0.0
        %1502 = vmatpush1.msra.mxu0 0.0
        %1503 = vmatprep.subr.mxu0 0.0
        %1504 = vmatpush1.msra.mxu0 0.0
        %1505 = vmatprep.subr.mxu0 0.0
        %1506 = vmatpush1.msra.mxu0 0.0
        %1507 = vmatprep.subr.mxu0 0.0
        %1508 = vmatpush1.msra.mxu0 0.0
        %1509 = vmatprep.subr.mxu0 0.0
        %1510 = vmatpush1.msra.mxu0 0.0
        %1511 = vmatprep.subr.mxu0 0.0
        %1512 = vmatpush1.msra.mxu0 0.0
        %1513 = vmatprep.subr.mxu0 0.0
        %1514 = vmatpush1.msra.mxu0 0.0
        %1515 = vmatprep.subr.mxu0 0.0
        %1516 = vmatpush1.msra.mxu0 0.0
        %1517 = vmatprep.subr.mxu0 0.0
        %1518 = vmatpush1.msra.mxu0 0.0
        %1519 = vmatprep.subr.mxu0 0.0
        %1520 = vmatpush1.msra.mxu0 0.0
        %1521 = vmatprep.subr.mxu0 0.0
        %1522 = vmatpush1.msra.mxu0 0.0
        %1523 = vmatprep.subr.mxu0 0.0
        %1524 = vmatpush1.msra.mxu0 0.0
        %1525 = vmatprep.subr.mxu0 0.0
        %1526 = vmatpush1.msra.mxu0 0.0
        %1527 = vmatprep.subr.mxu0 0.0
        %1528 = vmatpush1.msra.mxu0 0.0
        %1529 = vmatprep.subr.mxu0 0.0
        %1530 = vmatpush1.msra.mxu0 0.0
        %1531 = vmatprep.subr.mxu0 0.0
        %1532 = vmatpush1.msra.mxu0 0.0
        %1533 = vmatprep.subr.mxu0 0.0
        %1534 = vmatpush1.msra.mxu0 0.0
        %1535 = vmatprep.subr.mxu0 0.0
        %1536 = vmatpush1.msra.mxu0 0.0
        %1537 = vmatprep.mubr.f32.mxu0 0.0
        %1538 = vmatmul.mubr.f32.gmra.mrb[0].mxu0 %v1471
        %v1539 = vpop.f32.mrb[0].mxu0
        %v1540 = vadd.f32 0.0, %v1539
        %v1541 = vpop.f32.mrb[0].mxu0
        %1542 = vdwg.mxu0
        %v1543 = vadd.f32 %v851, %v1540
        %v1544 = vxor.u32 %v1543, 2147483648
        %v1545 = vmul.f32 %v1544, 1.442695
        %v1546 = vpow.pop %v1545
        %v1547 = vadd.f32 %v1546, 1.0
        %v1548 = vrcp.pop %v1547
        %v1549 = vmul.f32 1.0, %v1548
        %v1550 = vtanh.pop %v1543
        %v1551 = vmul.f32 %v1549, %v1461
        %1553 = vrot.lane.b32.xlu0 %v1550, 64
        %v1554 = vpop.permute.xlu0 %1553
        %v1556 = vmul.f32 %v1549, %v1554
        %1558 = vrot.lane.b32.xlu0 %v1556, 32
        %v1559 = vpop.permute.xlu0 %1558
        %v1561 = vadd.f32 %v1551, %v1559
        %v1562 = vtanh.pop %v1561
        %1564 = vrot.lane.b32.xlu0 %v1562, 64
        %v1565 = vpop.permute.xlu0 %1564
        %v1567 = vmul.f32 %v1549, %v1565
        %1569 = vrot.lane.b32.xlu0 %v1567, 32
        %v1570 = vpop.permute.xlu0 %1569
        %v1571 = vsel %vm865, %v1570, 0
        %1573 = vmatprep.subr.mxu0 0.0
        %1574 = vmatpush1.msra.mxu0 %v859
        %1575 = vmatprep.subr.mxu0 0.0
        %1576 = vmatpush1.msra.mxu0 %v860
        %1577 = vmatprep.subr.mxu0 0.0
        %1578 = vmatpush1.msra.mxu0 %v861
        %1579 = vmatprep.subr.mxu0 0.0
        %1580 = vmatpush1.msra.mxu0 %v862
        %1581 = vmatprep.subr.mxu0 0.0
        %1582 = vmatpush1.msra.mxu0 0.0
        %1583 = vmatprep.subr.mxu0 0.0
        %1584 = vmatpush1.msra.mxu0 0.0
        %1585 = vmatprep.subr.mxu0 0.0
        %1586 = vmatpush1.msra.mxu0 0.0
        %1587 = vmatprep.subr.mxu0 0.0
        %1588 = vmatpush1.msra.mxu0 0.0
        %1589 = vmatprep.subr.mxu0 0.0
        %1590 = vmatpush1.msra.mxu0 0.0
        %1591 = vmatprep.subr.mxu0 0.0
        %1592 = vmatpush1.msra.mxu0 0.0
        %1593 = vmatprep.subr.mxu0 0.0
        %1594 = vmatpush1.msra.mxu0 0.0
        %1595 = vmatprep.subr.mxu0 0.0
        %1596 = vmatpush1.msra.mxu0 0.0
        %1597 = vmatprep.subr.mxu0 0.0
        %1598 = vmatpush1.msra.mxu0 0.0
        %1599 = vmatprep.subr.mxu0 0.0
        %1600 = vmatpush1.msra.mxu0 0.0
        %1601 = vmatprep.subr.mxu0 0.0
        %1602 = vmatpush1.msra.mxu0 0.0
        %1603 = vmatprep.subr.mxu0 0.0
        %1604 = vmatpush1.msra.mxu0 0.0
        %1605 = vmatprep.subr.mxu0 0.0
        %1606 = vmatpush1.msra.mxu0 0.0
        %1607 = vmatprep.subr.mxu0 0.0
        %1608 = vmatpush1.msra.mxu0 0.0
        %1609 = vmatprep.subr.mxu0 0.0
        %1610 = vmatpush1.msra.mxu0 0.0
        %1611 = vmatprep.subr.mxu0 0.0
        %1612 = vmatpush1.msra.mxu0 0.0
        %1613 = vmatprep.subr.mxu0 0.0
        %1614 = vmatpush1.msra.mxu0 0.0
        %1615 = vmatprep.subr.mxu0 0.0
        %1616 = vmatpush1.msra.mxu0 0.0
        %1617 = vmatprep.subr.mxu0 0.0
        %1618 = vmatpush1.msra.mxu0 0.0
        %1619 = vmatprep.subr.mxu0 0.0
        %1620 = vmatpush1.msra.mxu0 0.0
        %1621 = vmatprep.subr.mxu0 0.0
        %1622 = vmatpush1.msra.mxu0 0.0
        %1623 = vmatprep.subr.mxu0 0.0
        %1624 = vmatpush1.msra.mxu0 0.0
        %1625 = vmatprep.subr.mxu0 0.0
        %1626 = vmatpush1.msra.mxu0 0.0
        %1627 = vmatprep.subr.mxu0 0.0
        %1628 = vmatpush1.msra.mxu0 0.0
        %1629 = vmatprep.subr.mxu0 0.0
        %1630 = vmatpush1.msra.mxu0 0.0
        %1631 = vmatprep.subr.mxu0 0.0
        %1632 = vmatpush1.msra.mxu0 0.0
        %1633 = vmatprep.subr.mxu0 0.0
        %1634 = vmatpush1.msra.mxu0 0.0
        %1635 = vmatprep.subr.mxu0 0.0
        %1636 = vmatpush1.msra.mxu0 0.0
        %1637 = vmatprep.mubr.f32.mxu0 0.0
        %1638 = vmatmul.mubr.f32.gmra.mrb[0].mxu0 %v1571
        %v1639 = vpop.f32.mrb[0].mxu0
        %v1640 = vadd.f32 0.0, %v1639
        %v1641 = vpop.f32.mrb[0].mxu0
        %1642 = vdwg.mxu0
        %v1643 = vadd.f32 %v856, %v1640
        %v1644 = vxor.u32 %v1643, 2147483648
        %v1645 = vmul.f32 %v1644, 1.442695
        %v1646 = vpow.pop %v1645
        %v1647 = vadd.f32 %v1646, 1.0
        %v1648 = vrcp.pop %v1647
        %v1649 = vmul.f32 1.0, %v1648
        %v1650 = vtanh.pop %v1643
        %v1651 = vmul.f32 %v1649, %v1561
        %1653 = vrot.lane.b32.xlu0 %v1650, 64
        %v1654 = vpop.permute.xlu0 %1653
        %v1656 = vmul.f32 %v1649, %v1654
        %1658 = vrot.lane.b32.xlu0 %v1656, 32
        %v1659 = vpop.permute.xlu0 %1658
        %v1661 = vadd.f32 %v1651, %v1659
        %v1662 = vtanh.pop %v1661
        %1664 = vrot.lane.b32.xlu0 %v1662, 64
        %v1665 = vpop.permute.xlu0 %1664
        %v1667 = vmul.f32 %v1649, %v1665
        %v1668 = vld [vmem:[%s8] sm:$0xff]
        %v1669 = vld [vmem:[%s8 + $0x8] sm:$0xff]
        %v1670 = vld [vmem:[%s8 + $0x10] sm:$0xff]
        %v1671 = vld [vmem:[%s8 + $0x18] sm:$0xff]
        %v1672 = vld [vmem:[%s9] sm:$0x1]
        %v1674 = vlaneseq
        %v1675 = vshrl.u32 %v1674, 7
        %v1676 = vsub.s32 0, %v1675
        %v1677 = vrot.slane %v1672, %v1676
        %1680 = vrot.lane.b32.xlu0 %v1667, 32
        %v1681 = vpop.permute.xlu0 %1680
        %v1682 = vsel %vm865, %v1681, 0
        %1684 = vmatprep.subr.mxu0 0.0
        %1685 = vmatpush1.msra.mxu0 %v1668
        %1686 = vmatprep.subr.mxu0 0.0
        %1687 = vmatpush1.msra.mxu0 %v1669
        %1688 = vmatprep.subr.mxu0 0.0
        %1689 = vmatpush1.msra.mxu0 %v1670
        %1690 = vmatprep.subr.mxu0 0.0
        %1691 = vmatpush1.msra.mxu0 %v1671
        %1692 = vmatprep.subr.mxu0 0.0
        %1693 = vmatpush1.msra.mxu0 0.0
        %1694 = vmatprep.subr.mxu0 0.0
        %1695 = vmatpush1.msra.mxu0 0.0
        %1696 = vmatprep.subr.mxu0 0.0
        %1697 = vmatpush1.msra.mxu0 0.0
        %1698 = vmatprep.subr.mxu0 0.0
        %1699 = vmatpush1.msra.mxu0 0.0
        %1700 = vmatprep.subr.mxu0 0.0
        %1701 = vmatpush1.msra.mxu0 0.0
        %1702 = vmatprep.subr.mxu0 0.0
        %1703 = vmatpush1.msra.mxu0 0.0
        %1704 = vmatprep.subr.mxu0 0.0
        %1705 = vmatpush1.msra.mxu0 0.0
        %1706 = vmatprep.subr.mxu0 0.0
        %1707 = vmatpush1.msra.mxu0 0.0
        %1708 = vmatprep.subr.mxu0 0.0
        %1709 = vmatpush1.msra.mxu0 0.0
        %1710 = vmatprep.subr.mxu0 0.0
        %1711 = vmatpush1.msra.mxu0 0.0
        %1712 = vmatprep.subr.mxu0 0.0
        %1713 = vmatpush1.msra.mxu0 0.0
        %1714 = vmatprep.subr.mxu0 0.0
        %1715 = vmatpush1.msra.mxu0 0.0
        %1716 = vmatprep.subr.mxu0 0.0
        %1717 = vmatpush1.msra.mxu0 0.0
        %1718 = vmatprep.subr.mxu0 0.0
        %1719 = vmatpush1.msra.mxu0 0.0
        %1720 = vmatprep.subr.mxu0 0.0
        %1721 = vmatpush1.msra.mxu0 0.0
        %1722 = vmatprep.subr.mxu0 0.0
        %1723 = vmatpush1.msra.mxu0 0.0
        %1724 = vmatprep.subr.mxu0 0.0
        %1725 = vmatpush1.msra.mxu0 0.0
        %1726 = vmatprep.subr.mxu0 0.0
        %1727 = vmatpush1.msra.mxu0 0.0
        %1728 = vmatprep.subr.mxu0 0.0
        %1729 = vmatpush1.msra.mxu0 0.0
        %1730 = vmatprep.subr.mxu0 0.0
        %1731 = vmatpush1.msra.mxu0 0.0
        %1732 = vmatprep.subr.mxu0 0.0
        %1733 = vmatpush1.msra.mxu0 0.0
        %1734 = vmatprep.subr.mxu0 0.0
        %1735 = vmatpush1.msra.mxu0 0.0
        %1736 = vmatprep.subr.mxu0 0.0
        %1737 = vmatpush1.msra.mxu0 0.0
        %1738 = vmatprep.subr.mxu0 0.0
        %1739 = vmatpush1.msra.mxu0 0.0
        %1740 = vmatprep.subr.mxu0 0.0
        %1741 = vmatpush1.msra.mxu0 0.0
        %1742 = vmatprep.subr.mxu0 0.0
        %1743 = vmatpush1.msra.mxu0 0.0
        %1744 = vmatprep.subr.mxu0 0.0
        %1745 = vmatpush1.msra.mxu0 0.0
        %1746 = vmatprep.subr.mxu0 0.0
        %1747 = vmatpush1.msra.mxu0 0.0
        %1748 = vmatprep.mubr.f32.mxu0 0.0
        %1749 = vmatmul.mubr.f32.gmra.mrb[0].mxu0 %v971
        %v1750 = vpop.f32.mrb[0].mxu0
        %v1751 = vadd.f32 %v1677, %v1750
        %v1752 = vpop.f32.mrb[0].mxu0
        %1753 = vmatprep.mubr.f32.mxu0 0.0
        %1754 = vmatmul.mubr.f32.gmra.mrb[0].mxu0 %v1071
        %v1755 = vpop.f32.mrb[0].mxu0
        %v1756 = vadd.f32 %v1677, %v1755
        %v1757 = vpop.f32.mrb[0].mxu0
        %1758 = vmatprep.mubr.f32.mxu0 0.0
        %1759 = vmatmul.mubr.f32.gmra.mrb[0].mxu0 %v1171
        %v1760 = vpop.f32.mrb[0].mxu0
        %v1761 = vadd.f32 %v1677, %v1760
        %v1762 = vpop.f32.mrb[0].mxu0
        %1763 = vmatprep.mubr.f32.mxu0 0.0
        %1764 = vmatmul.mubr.f32.gmra.mrb[0].mxu0 %v1271
        %v1765 = vpop.f32.mrb[0].mxu0
        %v1766 = vadd.f32 %v1677, %v1765
        %v1767 = vpop.f32.mrb[0].mxu0
        %1768 = vmatprep.mubr.f32.mxu0 0.0
        %1769 = vmatmul.mubr.f32.gmra.mrb[0].mxu0 %v1371
        %v1770 = vpop.f32.mrb[0].mxu0
        %v1771 = vadd.f32 %v1677, %v1770
        %v1772 = vpop.f32.mrb[0].mxu0
        %1773 = vmatprep.mubr.f32.mxu0 0.0
        %1774 = vmatmul.mubr.f32.gmra.mrb[0].mxu0 %v1471
        %v1775 = vpop.f32.mrb[0].mxu0
        %v1776 = vadd.f32 %v1677, %v1775
        %v1777 = vpop.f32.mrb[0].mxu0
        %1778 = vmatprep.mubr.f32.mxu0 0.0
        %1779 = vmatmul.mubr.f32.gmra.mrb[0].mxu0 %v1571
        %v1780 = vpop.f32.mrb[0].mxu0
        %v1781 = vadd.f32 %v1677, %v1780
        %v1782 = vpop.f32.mrb[0].mxu0
        %1783 = vmatprep.mubr.f32.mxu0 0.0
        %1784 = vmatmul.mubr.f32.gmra.mrb[0].mxu0 %v1682
        %v1785 = vpop.f32.mrb[0].mxu0
        %v1786 = vadd.f32 %v1677, %v1785
        %v1787 = vpop.f32.mrb[0].mxu0
        %1788 = vdwg.mxu0
        %vm1789 = vcmask 31744
        %1790 = vst.msk [vmem:[%s488] sm:$0xff] %vm1789, %v1751
        %1791 = vst.msk [vmem:[%s488 + $0x8] sm:$0xff] %vm1789, %v1756
        %1792 = vst.msk [vmem:[%s488 + $0x10] sm:$0xff] %vm1789, %v1761
        %1793 = vst.msk [vmem:[%s488 + $0x18] sm:$0xff] %vm1789, %v1766
        %1794 = vst.msk [vmem:[%s488 + $0x20] sm:$0xff] %vm1789, %v1771
        %1795 = vst.msk [vmem:[%s488 + $0x28] sm:$0xff] %vm1789, %v1776
        %1796 = vst.msk [vmem:[%s488 + $0x30] sm:$0xff] %vm1789, %v1781
        %1797 = vst.msk [vmem:[%s488 + $0x38] sm:$0xff] %vm1789, %v1786
        %1799 = vst.msk [vmem:[%s461] sm:$0xff] %vm865, %v1681
        %1801 = vrot.lane.b32.xlu0 %v1661, 96
        %v1802 = vpop.permute.xlu0 %1801
        %1804 = vst.msk [vmem:[%s468] sm:$0xff] %vm865, %v1802
        %s1805 = smul.u32 8, %s31
        %p1806 = scmp.lt.s32.totalorder %s1805, 15
        %s1807 = scalar_select %p1806, %s1805, 15
        %s1808 = smul.addr %s1807, 8
        %s1809 = scalar_lea.vmem %s10, %s1808
        %s1810 = sand.u32 %s290, 1
        %s1811 = scalar_lea.sflag [#allocation4], %s1810
        %s1812 = sand.u32 %s290, 1
        %s1813 = smul.addr %s1812, 8
        %s1814 = scalar_lea.vmem [#allocation5], %s1813
        %s1815 = sand.u32 %s316, 1
        %s1816 = scalar_lea.sflag [#allocation7], %s1815
        %s1817 = sand.u32 %s316, 1
        %s1818 = smul.addr %s1817, 8
        %s1819 = scalar_lea.vmem [#allocation6], %s1818
        // Predicated region
        $region65: #{tpu_custom_call.1} parent=59 // pred_check
          %p1820 = pneg %p274
        $region66: #{tpu_custom_call.1} parent=59 // pred_check_branch
          %1822 = sbr.rel (%p1820) target = $region68
        $region67: #{tpu_custom_call.1} parent=59 // pred_region
          %s1823 = smul.u32 8, %s31
        $region68: #{tpu_custom_call.1} parent=59 // pred_fallthru
          _
        // Predicated region
        $region69: #{tpu_custom_call.1} parent=59 // pred_check
          %p1824 = pneg %p300
        $region70: #{tpu_custom_call.1} parent=59 // pred_check_branch
          %1826 = sbr.rel (%p1824) target = $region72
        $region71: #{tpu_custom_call.1} parent=59 // pred_region
          %s1828 = ssub.s32 128, 128
          %1829 = vsyncadd %s1811, %s1828
          %s1830 = smul.addr %s31, 128
          %s1831 = scalar_lea.hbm %s11, %s1830
          %s1833 = sshll.u32 %s1814, 4
          %s1834 = int_to_ptr.vmem [resolvable:$true] %s1833
          %1836 = dma.vmem_to_hbm [thread:$0]  %s1834, 128, %s1831, %s1811
        $region72: #{tpu_custom_call.1} parent=59 // pred_fallthru
          _
        // Predicated region
        $region73: #{tpu_custom_call.1} parent=59 // pred_check
          %p1837 = pneg %p326
        $region74: #{tpu_custom_call.1} parent=59 // pred_check_branch
          %1839 = sbr.rel (%p1837) target = $region76
        $region75: #{tpu_custom_call.1} parent=59 // pred_region
          %s1841 = ssub.s32 128, 128
          %1842 = vsyncadd %s1816, %s1841
          %s1843 = smul.addr %s31, 128
          %s1844 = scalar_lea.hbm %s12, %s1843
          %s1846 = sshll.u32 %s1819, 4
          %s1847 = int_to_ptr.vmem [resolvable:$true] %s1846
          %1849 = dma.vmem_to_hbm [thread:$0]  %s1847, 128, %s1844, %s1816
        $region76: #{tpu_custom_call.1} parent=59 // pred_fallthru
          _
      $region60: #{tpu_custom_call.1} parent=5 // pred_fallthru
        _
      %p1850 = scmp.le.s32.totalorder 2, %s26
      // Predicated region
      $region77: #{tpu_custom_call.1} parent=5 // pred_check
        %p1851 = pneg %p1850
      $region78: #{tpu_custom_call.1} parent=5 // pred_check_branch
        %1853 = sbr.rel (%p1851) target = $region80
      $region79: #{tpu_custom_call.1} parent=5 // pred_region
        %s1854 = ssub.s32 %s26, 2
        // Predicated region
        $region81: #{tpu_custom_call.1} parent=79 // pred_check
          %p1855 = pneg %p280
        $region82: #{tpu_custom_call.1} parent=79 // pred_check_branch
          %1857 = sbr.rel (%p1855) target = $region84
        $region83: #{tpu_custom_call.1} parent=79 // pred_region
          %s1858 = smul.u32 8, %s32
          %p1859 = scmp.lt.s32.totalorder %s1858, 15
          %s1860 = scalar_select %p1859, %s1858, 15
          %s1861 = smul.addr %s1860, 8
          %s1862 = scalar_lea.vmem %s10, %s1861
        $region84: #{tpu_custom_call.1} parent=79 // pred_fallthru
          _
        // Predicated region
        $region85: #{tpu_custom_call.1} parent=79 // pred_check
          %p1863 = pneg %p306
        $region86: #{tpu_custom_call.1} parent=79 // pred_check_branch
          %1865 = sbr.rel (%p1863) target = $region88
        $region87: #{tpu_custom_call.1} parent=79 // pred_region
          %s1866 = sand.u32 %s291, 1
          %s1867 = scalar_lea.sflag [#allocation4], %s1866
          %s1868 = sand.u32 %s291, 1
          %s1869 = smul.addr %s1868, 8
          %s1870 = scalar_lea.vmem [#allocation5], %s1869
          %1871 = dma.done %s1867, 128
        $region88: #{tpu_custom_call.1} parent=79 // pred_fallthru
          _
        // Predicated region
        $region89: #{tpu_custom_call.1} parent=79 // pred_check
          %p1872 = pneg %p332
        $region90: #{tpu_custom_call.1} parent=79 // pred_check_branch
          %1874 = sbr.rel (%p1872) target = $region92
        $region91: #{tpu_custom_call.1} parent=79 // pred_region
          %s1875 = sand.u32 %s317, 1
          %s1876 = scalar_lea.sflag [#allocation7], %s1875
          %s1877 = sand.u32 %s317, 1
          %s1878 = smul.addr %s1877, 8
          %s1879 = scalar_lea.vmem [#allocation6], %s1878
          %1880 = dma.done %s1876, 128
        $region92: #{tpu_custom_call.1} parent=79 // pred_fallthru
          _
      $region80: #{tpu_custom_call.1} parent=5 // pred_fallthru
        _
    $region6: #{tpu_custom_call.1} parent=1 // loop_footer
      %s30 = sadd.s32 1, %s26
    $region7: #{tpu_custom_call.1} parent=1 // loop_footer_branch
      %25 = sbr.rel target = $region3
    $region8: #{tpu_custom_call.1} parent=1 // loop_exit
      _
    %1881 = vsyncpa [#allocation3], 1
    %s1882 = scalar_lea.sflag [#allocation3], 1
    %1883 = vsyncpa %s1882, 1
    %1884 = vsyncpa [#allocation4], 1
    %s1885 = scalar_lea.sflag [#allocation4], 1
    %1886 = vsyncpa %s1885, 1
    %1887 = vsyncpa [#allocation7], 1
    %s1888 = scalar_lea.sflag [#allocation7], 1
    %1889 = vsyncpa %s1888, 1

</llo_original>
